<compile_context>
chip_gen: v7x
topology: tpu7x:2x2x1
jax: 0.10.0
libtpu: 0.0.40
codegen_flags: <defaults>
</compile_context>

<pallas_src>
import functools

import jax
import jax.numpy as jnp
from jax.experimental import pallas as pl
from jax.experimental.pallas import tpu as pltpu

NEG_SLOPE = 0.01     # F.leaky_relu default negative_slope
TILE = 512           # row/K tile: multiple of 256 (v6e/v7x MXU) and 128 (v5e)
LANE = 128           # lane-dense output width


def _round_up(x, m):
    return ((x + m - 1) // m) * m


def _leaky_relu(h):
    return jnp.where(h > 0, h, NEG_SLOPE * h)


def gcn_layer_kernel(a_ref, x_ref, w_ref, b_ref, o_ref, acc_ref, *, tk):
    """One tile step of leaky_relu((A @ X) @ W + b).

    acc += A_tile(bf16) @ X_rows(bf16) with f32 accumulation; on the last K
    step run the (bf16-in, f32-acc) weight matmul + f32 bias + leaky_relu and
    store a lane-dense (tm, 128) output tile.
    X is resident in VMEM; the K-rows are sliced in-kernel with pl.ds.
    """
    k = pl.program_id(1)

    @pl.when(k == 0)
    def _():
        acc_ref[...] = jnp.zeros_like(acc_ref)

    x_start = pl.multiple_of(k * tk, tk)
    x_blk = x_ref[pl.ds(x_start, tk), :]
    # dominant aggregation matmul: bf16 inputs, f32 accumulation on the MXU
    acc_ref[...] += jnp.dot(a_ref[...], x_blk,
                            preferred_element_type=jnp.float32)

    @pl.when(k == pl.num_programs(1) - 1)
    def _():
        h = jnp.dot(acc_ref[...].astype(jnp.bfloat16), w_ref[...],
                    preferred_element_type=jnp.float32) + b_ref[...]
        o_ref[...] = _leaky_relu(h).astype(o_ref.dtype)


def _gcn_layer(a_bf16, x_bf16, w_bf16, b_f32, *, tm, tk, out_dtype):
    """leaky_relu((A @ X) @ W + b), A tiled over a (rows, K) grid."""
    n_pad = a_bf16.shape[0]
    f_in = x_bf16.shape[1]
    h_pad = w_bf16.shape[1]
    grid = (n_pad // tm, n_pad // tk)

    return pl.pallas_call(
        functools.partial(gcn_layer_kernel, tk=tk),
        out_shape=jax.ShapeDtypeStruct((n_pad, h_pad), out_dtype),
        grid_spec=pltpu.PrefetchScalarGridSpec(
            num_scalar_prefetch=0,
            grid=grid,
            in_specs=[
                # A tile (bf16), streamed / double-buffered.
                # TODO(synk): if an xprof trace shows exposed A DMA, add
                # pipeline_mode=pl.Buffered(3) here and sweep.
                pl.BlockSpec((tm, tk), lambda i, k: (i, k)),
                # X resident in VMEM (constant block index -> DMA'd once).
                pl.BlockSpec((n_pad, f_in), lambda i, k: (0, 0)),
                # W (resident, bf16) and bias (resident, f32).
                pl.BlockSpec((f_in, h_pad), lambda i, k: (0, 0)),
                pl.BlockSpec((1, h_pad), lambda i, k: (0, 0)),
            ],
            out_specs=pl.BlockSpec((tm, h_pad), lambda i, k: (i, 0)),
            scratch_shapes=[pltpu.VMEM((tm, f_in), jnp.float32)],
        ),
        compiler_params=pltpu.CompilerParams(
            dimension_semantics=("parallel", "arbitrary")),
    )(a_bf16, x_bf16, w_bf16, b_f32)


def gcn_edge_forward(a_norm, x, w1, b1, w2, b2):
    """GCN_edge.forward hot path: two stacked GCN layers + leaky_relu."""
    n, f_in = x.shape
    h1, h2 = w1.shape[1], w2.shape[1]
    h_pad = _round_up(max(h1, h2, LANE), LANE)   # lane-dense output width

    if n > TILE:
        n_pad = _round_up(n, TILE)
        tm = tk = TILE
    else:
        # bf16 needs 16-sublane / 128-lane alignment; keep >= 2 row tiles when
        # possible so v7x's second TensorCore has work.
        n_pad = _round_up(n, LANE)
        tm = n_pad // 2 if n_pad >= 2 * LANE else n_pad
        tk = n_pad

    # pad + cast A once (bf16, values in [0,1]); read by both layers.
    # TODO(synk): on v7x an fp8-e4m3 A (f32 acc) would halve the dominant HBM
    # stream; int8 on v5e/v6e. Needs a tighter accuracy budget, so not done.
    a_bf16 = jnp.zeros((n_pad, n_pad), jnp.bfloat16)
    a_bf16 = a_bf16.at[:n, :n].set(a_norm.astype(jnp.bfloat16))

    x_p = jnp.zeros((n_pad, f_in), jnp.bfloat16).at[:n].set(x.astype(jnp.bfloat16))

    def pad_params(w, b, k_pad):
        # zero padding: padded W rows/cols and padded bias entries stay zero so
        # padded intermediate columns never contaminate valid outputs.
        wp = jnp.zeros((k_pad, h_pad), jnp.bfloat16)
        wp = wp.at[:w.shape[0], :w.shape[1]].set(w.astype(jnp.bfloat16))
        bp = jnp.zeros((1, h_pad), jnp.float32).at[:, :b.shape[-1]].set(
            b.reshape(1, -1).astype(jnp.float32))
        return wp, bp

    w1p, b1p = pad_params(w1, b1, f_in)
    w2p, b2p = pad_params(w2, b2, h_pad)

    # layer 1: bf16 lane-dense (n_pad, 128) intermediate, consumed directly by
    # layer 2 (no wrapper-side slice/cast round trip through HBM).
    h = _gcn_layer(a_bf16, x_p, w1p, b1p, tm=tm, tk=tk, out_dtype=jnp.bfloat16)

    # layer 2: f32 output, slice back to true shape at the end only.
    out = _gcn_layer(a_bf16, h, w2p, b2p, tm=tm, tk=tk, out_dtype=jnp.float32)
    return out[:n, :h2]


def build_gcn_norm_adj(edge_index, edge_weight, num_nodes):
    """Dense D^-1/2 (A + I) D^-1/2 from COO edges + scalar edge weights (glue)."""
    row = edge_index[0]  # source
    col = edge_index[1]  # target
    loop = jnp.arange(num_nodes, dtype=edge_index.dtype)
    row = jnp.concatenate([row, loop])
    col = jnp.concatenate([col, loop])
    w = jnp.concatenate([edge_weight.astype(jnp.float32),
                         jnp.ones((num_nodes,), jnp.float32)])
    deg = jnp.zeros((num_nodes,), jnp.float32).at[col].add(w)
    dinv = jnp.where(deg > 0, 1.0 / jnp.sqrt(deg), 0.0)
    norm = dinv[row] * w * dinv[col]
    # A[dst, src] so that (A @ X)[dst] = sum_src norm * X[src]
    a = jnp.zeros((num_nodes, num_nodes), jnp.float32).at[col, row].add(norm)
    return a


if __name__ == "__main__":
    # TODO(synk): the unused `self.out` Sequential head (LazyLinear/Sigmoid) is
    # not part of forward() and is intentionally not implemented.
    # TODO(synk): for Twitter-scale sparse graphs the dense A @ H aggregation
    # should become a scalar-prefetch (PrefetchScalarGridSpec) CSR gather-SpMM;
    # the dense tiled form here is the correct hot path for modest N.
    key = jax.random.PRNGKey(0)
    # N > TILE exercises the padded 2x2 tiled grid (n_pad = 1024, tm = tk = 512)
    N, F_IN, H1, H2, E = 640, 16, 32, 32, 4096
    k1, k2, k3, k4, k5, k6, k7 = jax.random.split(key, 7)

    x = jax.random.normal(k1, (N, F_IN), dtype=jnp.float32)
    edge_index = jax.random.randint(k2, (2, E), 0, N, dtype=jnp.int32)
    edge_attr = jax.random.uniform(k3, (E,), dtype=jnp.float32)

    # Deterministic parameter init (Glorot-ish scaling), biases as (1, H) rows.
    w1 = jax.random.normal(k4, (F_IN, H1), dtype=jnp.float32) / jnp.sqrt(F_IN)
    b1 = 0.1 * jax.random.normal(k6, (1, H1), dtype=jnp.float32)
    w2 = jax.random.normal(k5, (H1, H2), dtype=jnp.float32) / jnp.sqrt(H1)
    b2 = 0.1 * jax.random.normal(k7, (1, H2), dtype=jnp.float32)

    a_norm = build_gcn_norm_adj(edge_index, edge_attr, N)

    out = gcn_edge_forward(a_norm, x, w1, b1, w2, b2)
    jax.block_until_ready(out)

    # pure-f32 JAX reference; bf16 A / bf16 intermediate / bf16 epilogue inputs
    # round in roughly the 2nd-3rd decimal digit, hence the loose tolerance.
    def ref_layer(a, h, w, b):
        return _leaky_relu(a @ (h @ w) + b)
    expected = ref_layer(a_norm, ref_layer(a_norm, x, w1, b1), w2, b2)
    max_err = jnp.max(jnp.abs(out - expected))

    assert out.shape == (N, H2) and out.dtype == jnp.float32
    assert bool(max_err < 1.5e-1), f"max abs error too large: {max_err}"
    print("KERNEL_OK")
</pallas_src>

<mosaic_0001>
module attributes {stable_mosaic.version = 11 : i64} {
  func.func @gcn_layer_kernel(%arg0: i32, %arg1: i32, %arg2: memref<512x512xbf16, #tpu.memory_space<vmem>>, %arg3: memref<1024x16xbf16, #tpu.memory_space<vmem>>, %arg4: memref<16x128xbf16, #tpu.memory_space<vmem>>, %arg5: memref<1x128xf32, #tpu.memory_space<vmem>>, %arg6: memref<512x128xbf16, #tpu.memory_space<vmem>>, %arg7: memref<512x16xf32, #tpu.memory_space<vmem>>) attributes {dimension_semantics = [#tpu.dimension_semantics<parallel>, #tpu.dimension_semantics<arbitrary>], iteration_bounds = array<i64: 2, 2>, scalar_prefetch = 0 : i64, scratch_operands = 1 : i64, tpu.core_type = #tpu.core_type<tc>, window_params = [{transform_indices = @transform_0, window_bounds = array<i64: 512, 512>}, {pipeline_mode = #tpu.pipeline_mode<synchronous>, transform_indices = @transform_1, window_bounds = array<i64: 1024, 16>}, {pipeline_mode = #tpu.pipeline_mode<synchronous>, transform_indices = @transform_2, window_bounds = array<i64: 16, 128>}, {pipeline_mode = #tpu.pipeline_mode<synchronous>, transform_indices = @transform_3, window_bounds = array<i64: 1, 128>}, {transform_indices = @transform_4, window_bounds = array<i64: 512, 128>}]} {
    %c0_i32 = arith.constant 0 : i32
    %0 = arith.cmpi eq, %arg1, %c0_i32 : i32
    %1 = arith.extui %0 : i1 to i32
    %c0_i32_0 = arith.constant 0 : i32
    %2 = arith.cmpi ne, %1, %c0_i32_0 : i32
    scf.if %2 {
      %cst_8 = arith.constant 0.000000e+00 : f32
      %15 = vector.broadcast %cst_8 : f32 to vector<512x16xf32>
      %c0_9 = arith.constant 0 : index
      %c0_10 = arith.constant 0 : index
      %16 = vector.load %arg7[%c0_9, %c0_10] : memref<512x16xf32, #tpu.memory_space<vmem>>, vector<512x16xf32>
      tpu.vector_store %arg7[%c0_9, %c0_10], %15 {strides = array<i32>} : memref<512x16xf32, #tpu.memory_space<vmem>>, vector<512x16xf32>,
    } else {
    }
    %c512_i32 = arith.constant 512 : i32
    %3 = arith.muli %arg1, %c512_i32 : i32
    %4 = tpu.assume_multiple %3, 512 : i32
    %5 = arith.index_cast %4 : i32 to index
    %c0 = arith.constant 0 : index
    %6 = vector.load %arg3[%5, %c0] : memref<1024x16xbf16, #tpu.memory_space<vmem>>, vector<512x16xbf16>
    %c0_1 = arith.constant 0 : index
    %c0_2 = arith.constant 0 : index
    %7 = vector.load %arg7[%c0_1, %c0_2] : memref<512x16xf32, #tpu.memory_space<vmem>>, vector<512x16xf32>
    %c0_3 = arith.constant 0 : index
    %c0_4 = arith.constant 0 : index
    %8 = vector.load %arg2[%c0_3, %c0_4] : memref<512x512xbf16, #tpu.memory_space<vmem>>, vector<512x512xbf16>
    %cst = arith.constant dense<0.000000e+00> : vector<512x16xf32>
    %9 = tpu.matmul %8, %6, %cst {dimension_numbers = #tpu.dot_dimension_numbers<[1], [0], [0], [1], [0, 0, 1, 1], [], []>} : vector<512x512xbf16>, vector<512x16xbf16>, vector<512x16xf32> -> vector<512x16xf32>
    %10 = arith.addf %7, %9 : vector<512x16xf32>
    %c0_5 = arith.constant 0 : index
    %c0_6 = arith.constant 0 : index
    %11 = vector.load %arg7[%c0_5, %c0_6] : memref<512x16xf32, #tpu.memory_space<vmem>>, vector<512x16xf32>
    tpu.vector_store %arg7[%c0_5, %c0_6], %10 {strides = array<i32>} : memref<512x16xf32, #tpu.memory_space<vmem>>, vector<512x16xf32>,
    %c1_i32 = arith.constant 1 : i32
    %12 = arith.cmpi eq, %arg1, %c1_i32 : i32
    %13 = arith.extui %12 : i1 to i32
    %c0_i32_7 = arith.constant 0 : i32
    %14 = arith.cmpi ne, %13, %c0_i32_7 : i32
    scf.if %14 {
      %c0_8 = arith.constant 0 : index
      %c0_9 = arith.constant 0 : index
      %15 = vector.load %arg7[%c0_8, %c0_9] : memref<512x16xf32, #tpu.memory_space<vmem>>, vector<512x16xf32>
      %16 = arith.truncf %15 : vector<512x16xf32> to vector<512x16xbf16>
      %c0_10 = arith.constant 0 : index
      %c0_11 = arith.constant 0 : index
      %17 = vector.load %arg4[%c0_10, %c0_11] : memref<16x128xbf16, #tpu.memory_space<vmem>>, vector<16x128xbf16>
      %cst_12 = arith.constant dense<0.000000e+00> : vector<512x128xf32>
      %18 = tpu.matmul %16, %17, %cst_12 {dimension_numbers = #tpu.dot_dimension_numbers<[1], [0], [0], [1], [0, 0, 1, 1], [], []>} : vector<512x16xbf16>, vector<16x128xbf16>, vector<512x128xf32> -> vector<512x128xf32>
      %c0_13 = arith.constant 0 : index
      %c0_14 = arith.constant 0 : index
      %19 = vector.load %arg5[%c0_13, %c0_14] : memref<1x128xf32, #tpu.memory_space<vmem>>, vector<1x128xf32>
      %20 = vector.broadcast %19 : vector<1x128xf32> to vector<512x128xf32>
      %21 = arith.addf %18, %20 : vector<512x128xf32>
      %cst_15 = arith.constant 0.000000e+00 : f32
      %22 = vector.broadcast %cst_15 : f32 to vector<512x128xf32>
      %23 = arith.cmpf ogt, %21, %22 : vector<512x128xf32>
      %cst_16 = arith.constant 0.00999999977 : f32
      %24 = vector.broadcast %cst_16 : f32 to vector<512x128xf32>
      %25 = arith.mulf %24, %21 : vector<512x128xf32>
      %26 = arith.select %23, %21, %25 : vector<512x128xi1>, vector<512x128xf32>
      %27 = arith.truncf %26 : vector<512x128xf32> to vector<512x128xbf16>
      %c0_17 = arith.constant 0 : index
      %c0_18 = arith.constant 0 : index
      %28 = vector.load %arg6[%c0_17, %c0_18] : memref<512x128xbf16, #tpu.memory_space<vmem>>, vector<512x128xbf16>
      tpu.vector_store %arg6[%c0_17, %c0_18], %27 {strides = array<i32>} : memref<512x128xbf16, #tpu.memory_space<vmem>>, vector<512x128xbf16>,
    } else {
    }
    return
  }
  func.func @transform_0(%arg0: i32, %arg1: i32) -> (i32, i32) {
    %c0_i32 = arith.constant 0 : i32
    return %arg0, %arg1 : i32, i32
  }
  func.func @transform_1(%arg0: i32, %arg1: i32) -> (i32, i32) {
    %c0_i32 = arith.constant 0 : i32
    %c0_i32_0 = arith.constant 0 : i32
    %c0_i32_1 = arith.constant 0 : i32
    return %c0_i32, %c0_i32_0 : i32, i32
  }
  func.func @transform_2(%arg0: i32, %arg1: i32) -> (i32, i32) {
    %c0_i32 = arith.constant 0 : i32
    %c0_i32_0 = arith.constant 0 : i32
    %c0_i32_1 = arith.constant 0 : i32
    return %c0_i32, %c0_i32_0 : i32, i32
  }
  func.func @transform_3(%arg0: i32, %arg1: i32) -> (i32, i32) {
    %c0_i32 = arith.constant 0 : i32
    %c0_i32_0 = arith.constant 0 : i32
    %c0_i32_1 = arith.constant 0 : i32
    return %c0_i32, %c0_i32_0 : i32, i32
  }
  func.func @transform_4(%arg0: i32, %arg1: i32) -> (i32, i32) {
    %c0_i32 = arith.constant 0 : i32
    %c0_i32_0 = arith.constant 0 : i32
    return %arg0, %c0_i32 : i32, i32
  }
}

</mosaic_0001>

<llo_original>
// kernel: tpu_custom_call.1
$region0: #{tpu_custom_call.1}
  #allocation0 [shape = 'u32[]', space=smem, size = 0x4, offset = 0x4, fixed_abs, tag = 'smem constant byte address 0x4 - core index']
  #allocation1 [shape = 'u32[144,128]{1,0:T(1,128)}', space=vmem, size = 0x12000, scoped, tag = 'internal scratch']
  #allocation2 [shape = 'f32[512,16]{1,0:T(8,128)}', space=vmem, size = 0x40000, scoped, tag = 'scratch operand']
  %s0 = inlined_call_operand.hbm [shape: bf16[1024,1024], index: 0, kind: input, shape index: {}]
  %s1 = inlined_call_operand.vmem [shape: bf16[1024,16], index: 1, kind: input, shape index: {}]
  %s2 = inlined_call_operand.hbm [shape: bf16[16,128], index: 2, kind: input, shape index: {}]
  %s3 = inlined_call_operand.hbm [shape: f32[1,128], index: 3, kind: input, shape index: {}]
  %s4 = inlined_call_operand.hbm [shape: bf16[1024,128], index: 4, kind: output, shape index: {}]
  %s5 = sld [smem:[#allocation0]]
  $region69: #{tpu_custom_call.1} parent=0
    _
  %s7 = ssub.s32 1, %s5
  %s8 = scalar_select 0, %s7, %s5
  $region1: #{tpu_custom_call.1} parent=0
    #allocation3 [shape = 'u8[1048576]{0}', space=vmem, size = 0x100000, scoped, tag = 'input window, operand 0']
    #allocation4 [shape = 's32[2]{0}', space=sflag, size = 0x8, scoped, tag = 'scoped memory for tpu_custom_call.1']
    #allocation5 [shape = 's32[2]{0}', space=sflag, size = 0x8, scoped, tag = 'scoped memory for tpu_custom_call.1']
    #allocation6 [shape = 'u8[4096]{0}', space=vmem, size = 0x1000, scoped, tag = 'input window, operand 2, single buffered']
    #allocation7 [shape = 's32[1]{0}', space=sflag, size = 0x4, scoped, tag = 'scoped memory for tpu_custom_call.1']
    #allocation8 [shape = 'u8[512]{0}', space=vmem, size = 0x400, scoped, tag = 'input window, operand 3, single buffered']
    #allocation9 [shape = 'u8[262144]{0}', space=vmem, size = 0x40000, scoped, tag = 'output window, operand 0']
    %9 = vsyncpa [#allocation4], 0
    %s10 = scalar_lea.sflag [#allocation4], 1
    %11 = vsyncpa %s10, 0
    %12 = vsyncpa [#allocation7], 0
    %13 = vsyncpa [#allocation5], 0
    %s14 = scalar_lea.sflag [#allocation5], 1
    %15 = vsyncpa %s14, 0
    loop: start=0, step=1, limit=6
    $region2: #{tpu_custom_call.1} parent=1 // loop_pre_header
      _
    $region3: #{tpu_custom_call.1} parent=1 // loop_header
      %s17 = sphi 0, %s21
      %p18 = scmp.ge.s32.totalorder %s17, 6
      %s24 = sphi 0, %s36
      %s25 = sphi 0, %s32
      %s26 = sphi 0, %s24
      %s27 = sphi 0, %s25
      %s28 = sphi 0, %s26
      %s29 = sphi 0, %s27
      %s41 = sphi 0, %s43
      %s44 = sphi 0, %s41
      %s45 = sphi 0, %s44
      %s61 = sphi 0, %s45
      %s65 = sphi 0, %s65
      %s67 = sphi 0, %s65
      %s68 = sphi 0, %s67
      %s82 = sphi 0, %s68
      %s86 = sphi 0, %s86
      %s88 = sphi 0, %s86
      %s89 = sphi 0, %s88
      %s103 = sphi 0, %s89
      %s107 = sphi 0, %s107
      %s109 = sphi 0, %s107
      %s110 = sphi 0, %s109
      %s124 = sphi 0, %s110
      %s130 = sphi 0, %s132
      %s133 = sphi 0, %s130
      %s134 = sphi 0, %s133
      %s150 = sphi 0, %s134
    $region4: #{tpu_custom_call.1} parent=1 // loop_header_branch
      %20 = sbr.rel (%p18) target = $region8
    $region5: #{tpu_custom_call.1} parent=1 // loop_body
      %s22 = ssub.s32 %s17, 1
      %s23 = ssub.s32 %s17, 2
      %s30 = sadd.s32 1, %s25
      %p31 = scmp.ge.s32.totalorder %s30, 2
      %s32 = scalar_select %p31, 0, %s30
      %s33 = sadd.s32 1, %s24
      %s34 = scalar_select %p31, %s33, %s24
      %p35 = scmp.ge.s32.totalorder %s34, 2
      %s36 = scalar_select %p35, 0, %s34
      %s37 = ssub.s32 %s24, %s36
      %s38 = ssub.s32 %s25, %s32
      %s39 = sor.u32 %s37, %s38
      %p40 = scmp.eq.s32.totalorder %s39, 0
      %s42 = sadd.s32 %s41, 1
      %s43 = scalar_select %p40, %s41, %s42
      %p46 = pneg %p40
      %p47 = scmp.eq.s32.totalorder %s17, 3
      %p48 = por %p46, %p47
      %p49 = scmp.ne.s32.totalorder %s41, %s44
      %p50 = scmp.eq.s32.totalorder %s17, 0
      %p51 = por %p49, %p50
      %p52 = scmp.ne.s32.totalorder %s41, %s44
      %p53 = scmp.eq.s32.totalorder %s22, 3
      %p54 = por %p52, %p53
      %p55 = scmp.ne.s32.totalorder %s44, %s45
      %p56 = scmp.eq.s32.totalorder %s22, 0
      %p57 = por %p55, %p56
      %p58 = scmp.ne.s32.totalorder %s44, %s45
      %p59 = scmp.eq.s32.totalorder %s23, 3
      %p60 = por %p58, %p59
      %p62 = scmp.ne.s32.totalorder %s45, %s61
      %p63 = scmp.eq.s32.totalorder %s23, 0
      %p64 = por %p62, %p63
      %s66 = sadd.s32 %s65, 1
      %p69 = scmp.eq.s32.totalorder %s17, 3
      %p70 = scmp.ne.s32.totalorder %s65, %s67
      %p71 = scmp.eq.s32.totalorder %s17, 0
      %p72 = por %p70, %p71
      %p73 = scmp.ne.s32.totalorder %s65, %s67
      %p74 = scmp.eq.s32.totalorder %s22, 3
      %p75 = por %p73, %p74
      %p76 = scmp.ne.s32.totalorder %s67, %s68
      %p77 = scmp.eq.s32.totalorder %s22, 0
      %p78 = por %p76, %p77
      %p79 = scmp.ne.s32.totalorder %s67, %s68
      %p80 = scmp.eq.s32.totalorder %s23, 3
      %p81 = por %p79, %p80
      %p83 = scmp.ne.s32.totalorder %s68, %s82
      %p84 = scmp.eq.s32.totalorder %s23, 0
      %p85 = por %p83, %p84
      %s87 = sadd.s32 %s86, 1
      %p90 = scmp.eq.s32.totalorder %s17, 3
      %p91 = scmp.ne.s32.totalorder %s86, %s88
      %p92 = scmp.eq.s32.totalorder %s17, 0
      %p93 = por %p91, %p92
      %p94 = scmp.ne.s32.totalorder %s86, %s88
      %p95 = scmp.eq.s32.totalorder %s22, 3
      %p96 = por %p94, %p95
      %p97 = scmp.ne.s32.totalorder %s88, %s89
      %p98 = scmp.eq.s32.totalorder %s22, 0
      %p99 = por %p97, %p98
      %p100 = scmp.ne.s32.totalorder %s88, %s89
      %p101 = scmp.eq.s32.totalorder %s23, 3
      %p102 = por %p100, %p101
      %p104 = scmp.ne.s32.totalorder %s89, %s103
      %p105 = scmp.eq.s32.totalorder %s23, 0
      %p106 = por %p104, %p105
      %s108 = sadd.s32 %s107, 1
      %p111 = scmp.eq.s32.totalorder %s17, 3
      %p112 = scmp.ne.s32.totalorder %s107, %s109
      %p113 = scmp.eq.s32.totalorder %s17, 0
      %p114 = por %p112, %p113
      %p115 = scmp.ne.s32.totalorder %s107, %s109
      %p116 = scmp.eq.s32.totalorder %s22, 3
      %p117 = por %p115, %p116
      %p118 = scmp.ne.s32.totalorder %s109, %s110
      %p119 = scmp.eq.s32.totalorder %s22, 0
      %p120 = por %p118, %p119
      %p121 = scmp.ne.s32.totalorder %s109, %s110
      %p122 = scmp.eq.s32.totalorder %s23, 3
      %p123 = por %p121, %p122
      %p125 = scmp.ne.s32.totalorder %s110, %s124
      %p126 = scmp.eq.s32.totalorder %s23, 0
      %p127 = por %p125, %p126
      %s128 = ssub.s32 %s24, %s36
      %p129 = scmp.eq.s32.totalorder %s128, 0
      %s131 = sadd.s32 %s130, 1
      %s132 = scalar_select %p129, %s130, %s131
      %p135 = pneg %p129
      %p136 = scmp.eq.s32.totalorder %s17, 3
      %p137 = por %p135, %p136
      %p138 = scmp.ne.s32.totalorder %s130, %s133
      %p139 = scmp.eq.s32.totalorder %s17, 0
      %p140 = por %p138, %p139
      %p141 = scmp.ne.s32.totalorder %s130, %s133
      %p142 = scmp.eq.s32.totalorder %s22, 3
      %p143 = por %p141, %p142
      %p144 = scmp.ne.s32.totalorder %s133, %s134
      %p145 = scmp.eq.s32.totalorder %s22, 0
      %p146 = por %p144, %p145
      %p147 = scmp.ne.s32.totalorder %s133, %s134
      %p148 = scmp.eq.s32.totalorder %s23, 3
      %p149 = por %p147, %p148
      %p151 = scmp.ne.s32.totalorder %s134, %s150
      %p152 = scmp.eq.s32.totalorder %s23, 0
      %p153 = por %p151, %p152
      %p154 = scmp.le.s32.totalorder 1, %s17
      %p155 = scmp.lt.s32.totalorder %s17, 5
      %p156 = pnand %p154, %p155
      %p157 = pneg %p156
      // Predicated region
      $region9: #{tpu_custom_call.1} parent=5 // pred_check
        _
      $region10: #{tpu_custom_call.1} parent=5 // pred_check_branch
        %159 = sbr.rel (%p156) target = $region12
      $region11: #{tpu_custom_call.1} parent=5 // pred_region
        %s160 = ssub.s32 %s17, 1
        // Predicated region
        $region13: #{tpu_custom_call.1} parent=11 // pred_check
          %p161 = pneg %p78
        $region14: #{tpu_custom_call.1} parent=11 // pred_check_branch
          %163 = sbr.rel (%p161) target = $region16
        $region15: #{tpu_custom_call.1} parent=11 // pred_region
          _
        $region16: #{tpu_custom_call.1} parent=11 // pred_fallthru
          _
        // Predicated region
        $region17: #{tpu_custom_call.1} parent=11 // pred_check
          %p164 = pneg %p99
        $region18: #{tpu_custom_call.1} parent=11 // pred_check_branch
          %166 = sbr.rel (%p164) target = $region20
        $region19: #{tpu_custom_call.1} parent=11 // pred_region
          %s168 = ssub.s32 128, 128
          %169 = vsyncadd [#allocation7], %s168
          %s170 = sshll.u32 [#allocation6], 4
          %s171 = int_to_ptr.vmem [resolvable:$true] %s170
          %176 = dma.hbm_to_vmem [thread:$0]  %s2, 128, %s171, [#allocation7], 64, 64, 4
        $region20: #{tpu_custom_call.1} parent=11 // pred_fallthru
          _
        // Predicated region
        $region21: #{tpu_custom_call.1} parent=11 // pred_check
          %p177 = pneg %p120
        $region22: #{tpu_custom_call.1} parent=11 // pred_check_branch
          %179 = sbr.rel (%p177) target = $region24
        $region23: #{tpu_custom_call.1} parent=11 // pred_region
          %s181 = ssub.s32 16, 16
          %182 = vsyncadd [#allocation7], %s181
          %s184 = sshll.u32 [#allocation8], 4
          %s185 = int_to_ptr.vmem [resolvable:$true] %s184
          %187 = dma.hbm_to_vmem [thread:$0]  %s3, 16, %s185, [#allocation7]
        $region24: #{tpu_custom_call.1} parent=11 // pred_fallthru
          _
      $region12: #{tpu_custom_call.1} parent=5 // pred_fallthru
        _
      %p188 = scmp.lt.s32.totalorder %s17, 4
      // Predicated region
      $region25: #{tpu_custom_call.1} parent=5 // pred_check
        %p189 = pneg %p188
      $region26: #{tpu_custom_call.1} parent=5 // pred_check_branch
        %191 = sbr.rel (%p189) target = $region28
      $region27: #{tpu_custom_call.1} parent=5 // pred_region
        // Predicated region
        $region29: #{tpu_custom_call.1} parent=27 // pred_check
          %p192 = pneg %p51
        $region30: #{tpu_custom_call.1} parent=27 // pred_check_branch
          %194 = sbr.rel (%p192) target = $region32
        $region31: #{tpu_custom_call.1} parent=27 // pred_region
          %s195 = sand.u32 %s41, 1
          %s196 = scalar_lea.sflag [#allocation4], %s195
          %s197 = sand.u32 %s41, 1
          %s198 = smul.addr %s197, 1024
          %s199 = scalar_lea.vmem [#allocation3], %s198
          %s200 = smul.u32 64, %s24
          %s201 = smul.u32 4, %s25
          %s203 = ssub.s32 16384, 16384
          %204 = vsyncadd %s196, %s203
          %s205 = smul.addr %s200, 8
          %s206 = sadd.s32 %s201, %s205
          %s207 = smul.addr %s206, 64
          %s208 = scalar_lea.hbm %s0, %s207
          %s209 = sshll.u32 %s199, 4
          %s210 = int_to_ptr.vmem [resolvable:$true] %s209
          %215 = dma.hbm_to_vmem [thread:$0]  %s208, 16384, %s210, %s196, 512, 256, 16
        $region32: #{tpu_custom_call.1} parent=27 // pred_fallthru
          _
      $region28: #{tpu_custom_call.1} parent=5 // pred_fallthru
        _
      %p216 = scmp.le.s32.totalorder 1, %s17
      %p217 = scmp.lt.s32.totalorder %s17, 5
      %p218 = pnand %p216, %p217
      %p219 = pneg %p218
      // Predicated region
      $region33: #{tpu_custom_call.1} parent=5 // pred_check
        _
      $region34: #{tpu_custom_call.1} parent=5 // pred_check_branch
        %221 = sbr.rel (%p218) target = $region36
      $region35: #{tpu_custom_call.1} parent=5 // pred_region
        %s222 = ssub.s32 %s17, 1
        %s223 = sand.u32 %s44, 1
        %s224 = scalar_lea.sflag [#allocation4], %s223
        %s225 = sand.u32 %s44, 1
        %s226 = smul.addr %s225, 1024
        %s227 = scalar_lea.vmem [#allocation3], %s226
        // Predicated region
        $region37: #{tpu_custom_call.1} parent=35 // pred_check
          %p228 = pneg %p57
        $region38: #{tpu_custom_call.1} parent=35 // pred_check_branch
          %230 = sbr.rel (%p228) target = $region40
        $region39: #{tpu_custom_call.1} parent=35 // pred_region
          %231 = dma.done %s224, 16384
        $region40: #{tpu_custom_call.1} parent=35 // pred_fallthru
          _
        // Predicated region
        $region41: #{tpu_custom_call.1} parent=35 // pred_check
          %p232 = pneg %p99
        $region42: #{tpu_custom_call.1} parent=35 // pred_check_branch
          %234 = sbr.rel (%p232) target = $region44
        $region43: #{tpu_custom_call.1} parent=35 // pred_region
          %235 = dma.done [#allocation7], 128
        $region44: #{tpu_custom_call.1} parent=35 // pred_fallthru
          _
        // Predicated region
        $region45: #{tpu_custom_call.1} parent=35 // pred_check
          %p236 = pneg %p120
        $region46: #{tpu_custom_call.1} parent=35 // pred_check_branch
          %238 = sbr.rel (%p236) target = $region48
        $region47: #{tpu_custom_call.1} parent=35 // pred_region
          %239 = dma.done [#allocation7], 16
        $region48: #{tpu_custom_call.1} parent=35 // pred_fallthru
          _
        %s240 = sand.u32 %s44, 1
        %s241 = scalar_lea.sflag [#allocation4], %s240
        %s242 = sand.u32 %s44, 1
        %s243 = smul.addr %s242, 1024
        %s244 = scalar_lea.vmem [#allocation3], %s243
        %p245 = pneg %p57
        %p246 = pneg %p54
        %p247 = pneg %p78
        %p248 = pneg %p75
        %p249 = pneg %p99
        %p250 = pneg %p96
        %p251 = pneg %p120
        %p252 = pneg %p117
        %p253 = pneg %p146
        %p254 = pneg %p143
        %s255 = sand.u32 %s133, 1
        %s256 = scalar_lea.sflag [#allocation5], %s255
        %s257 = sand.u32 %s133, 1
        %s258 = smul.addr %s257, 256
        %s259 = scalar_lea.vmem [#allocation9], %s258
        %s260 = smul.u32 64, %s26
        %s261 = smul.u32 4, %s27
        %s262 = smul.u32 64, %s26
        %p264 = scmp.eq.s32.totalorder %s27, 0
        // Predicated region
        $region49: #{tpu_custom_call.1} parent=35 // pred_check
          %p265 = pneg %p264
        $region50: #{tpu_custom_call.1} parent=35 // pred_check_branch
          %267 = sbr.rel (%p265) target = $region52
        $region51: #{tpu_custom_call.1} parent=35 // pred_region
          %vm268 = vcmask 130048
          %269 = vst.msk [vmem:[#allocation2] sm:$0xff] %vm268, 0.0
          %270 = vst.msk [vmem:[#allocation2 + $0x8] sm:$0xff] %vm268, 0.0
          %271 = vst.msk [vmem:[#allocation2 + $0x10] sm:$0xff] %vm268, 0.0
          %272 = vst.msk [vmem:[#allocation2 + $0x18] sm:$0xff] %vm268, 0.0
          %273 = vst.msk [vmem:[#allocation2 + $0x20] sm:$0xff] %vm268, 0.0
          %274 = vst.msk [vmem:[#allocation2 + $0x28] sm:$0xff] %vm268, 0.0
          %275 = vst.msk [vmem:[#allocation2 + $0x30] sm:$0xff] %vm268, 0.0
          %276 = vst.msk [vmem:[#allocation2 + $0x38] sm:$0xff] %vm268, 0.0
          %277 = vst.msk [vmem:[#allocation2 + $0x40] sm:$0xff] %vm268, 0.0
          %278 = vst.msk [vmem:[#allocation2 + $0x48] sm:$0xff] %vm268, 0.0
          %279 = vst.msk [vmem:[#allocation2 + $0x50] sm:$0xff] %vm268, 0.0
          %280 = vst.msk [vmem:[#allocation2 + $0x58] sm:$0xff] %vm268, 0.0
          %281 = vst.msk [vmem:[#allocation2 + $0x60] sm:$0xff] %vm268, 0.0
          %282 = vst.msk [vmem:[#allocation2 + $0x68] sm:$0xff] %vm268, 0.0
          %283 = vst.msk [vmem:[#allocation2 + $0x70] sm:$0xff] %vm268, 0.0
          %284 = vst.msk [vmem:[#allocation2 + $0x78] sm:$0xff] %vm268, 0.0
          %285 = vst.msk [vmem:[#allocation2 + $0x80] sm:$0xff] %vm268, 0.0
          %286 = vst.msk [vmem:[#allocation2 + $0x88] sm:$0xff] %vm268, 0.0
          %287 = vst.msk [vmem:[#allocation2 + $0x90] sm:$0xff] %vm268, 0.0
          %288 = vst.msk [vmem:[#allocation2 + $0x98] sm:$0xff] %vm268, 0.0
          %289 = vst.msk [vmem:[#allocation2 + $0xa0] sm:$0xff] %vm268, 0.0
          %290 = vst.msk [vmem:[#allocation2 + $0xa8] sm:$0xff] %vm268, 0.0
          %291 = vst.msk [vmem:[#allocation2 + $0xb0] sm:$0xff] %vm268, 0.0
          %292 = vst.msk [vmem:[#allocation2 + $0xb8] sm:$0xff] %vm268, 0.0
          %293 = vst.msk [vmem:[#allocation2 + $0xc0] sm:$0xff] %vm268, 0.0
          %294 = vst.msk [vmem:[#allocation2 + $0xc8] sm:$0xff] %vm268, 0.0
          %295 = vst.msk [vmem:[#allocation2 + $0xd0] sm:$0xff] %vm268, 0.0
          %296 = vst.msk [vmem:[#allocation2 + $0xd8] sm:$0xff] %vm268, 0.0
          %297 = vst.msk [vmem:[#allocation2 + $0xe0] sm:$0xff] %vm268, 0.0
          %298 = vst.msk [vmem:[#allocation2 + $0xe8] sm:$0xff] %vm268, 0.0
          %299 = vst.msk [vmem:[#allocation2 + $0xf0] sm:$0xff] %vm268, 0.0
          %300 = vst.msk [vmem:[#allocation2 + $0xf8] sm:$0xff] %vm268, 0.0
          %301 = vst.msk [vmem:[#allocation2 + $0x100] sm:$0xff] %vm268, 0.0
          %302 = vst.msk [vmem:[#allocation2 + $0x108] sm:$0xff] %vm268, 0.0
          %303 = vst.msk [vmem:[#allocation2 + $0x110] sm:$0xff] %vm268, 0.0
          %304 = vst.msk [vmem:[#allocation2 + $0x118] sm:$0xff] %vm268, 0.0
          %305 = vst.msk [vmem:[#allocation2 + $0x120] sm:$0xff] %vm268, 0.0
          %306 = vst.msk [vmem:[#allocation2 + $0x128] sm:$0xff] %vm268, 0.0
          %307 = vst.msk [vmem:[#allocation2 + $0x130] sm:$0xff] %vm268, 0.0
          %308 = vst.msk [vmem:[#allocation2 + $0x138] sm:$0xff] %vm268, 0.0
          %309 = vst.msk [vmem:[#allocation2 + $0x140] sm:$0xff] %vm268, 0.0
          %310 = vst.msk [vmem:[#allocation2 + $0x148] sm:$0xff] %vm268, 0.0
          %311 = vst.msk [vmem:[#allocation2 + $0x150] sm:$0xff] %vm268, 0.0
          %312 = vst.msk [vmem:[#allocation2 + $0x158] sm:$0xff] %vm268, 0.0
          %313 = vst.msk [vmem:[#allocation2 + $0x160] sm:$0xff] %vm268, 0.0
          %314 = vst.msk [vmem:[#allocation2 + $0x168] sm:$0xff] %vm268, 0.0
          %315 = vst.msk [vmem:[#allocation2 + $0x170] sm:$0xff] %vm268, 0.0
          %316 = vst.msk [vmem:[#allocation2 + $0x178] sm:$0xff] %vm268, 0.0
          %317 = vst.msk [vmem:[#allocation2 + $0x180] sm:$0xff] %vm268, 0.0
          %318 = vst.msk [vmem:[#allocation2 + $0x188] sm:$0xff] %vm268, 0.0
          %319 = vst.msk [vmem:[#allocation2 + $0x190] sm:$0xff] %vm268, 0.0
          %320 = vst.msk [vmem:[#allocation2 + $0x198] sm:$0xff] %vm268, 0.0
          %321 = vst.msk [vmem:[#allocation2 + $0x1a0] sm:$0xff] %vm268, 0.0
          %322 = vst.msk [vmem:[#allocation2 + $0x1a8] sm:$0xff] %vm268, 0.0
          %323 = vst.msk [vmem:[#allocation2 + $0x1b0] sm:$0xff] %vm268, 0.0
          %324 = vst.msk [vmem:[#allocation2 + $0x1b8] sm:$0xff] %vm268, 0.0
          %325 = vst.msk [vmem:[#allocation2 + $0x1c0] sm:$0xff] %vm268, 0.0
          %326 = vst.msk [vmem:[#allocation2 + $0x1c8] sm:$0xff] %vm268, 0.0
          %327 = vst.msk [vmem:[#allocation2 + $0x1d0] sm:$0xff] %vm268, 0.0
          %328 = vst.msk [vmem:[#allocation2 + $0x1d8] sm:$0xff] %vm268, 0.0
          %329 = vst.msk [vmem:[#allocation2 + $0x1e0] sm:$0xff] %vm268, 0.0
          %330 = vst.msk [vmem:[#allocation2 + $0x1e8] sm:$0xff] %vm268, 0.0
          %331 = vst.msk [vmem:[#allocation2 + $0x1f0] sm:$0xff] %vm268, 0.0
          %332 = vst.msk [vmem:[#allocation2 + $0x1f8] sm:$0xff] %vm268, 0.0
        $region52: #{tpu_custom_call.1} parent=35 // pred_fallthru
          _
        %s333 = smul.u32 %s27, 512
        %s334 = sshra.s32 %s333, 3
        %s335 = sand.u32 %s333, 7
        %s336 = smul.addr %s334, 4
        %s337 = scalar_lea.vmem %s1, %s336
        %v338 = vld [vmem:[%s337] sm:$0xf]
        %v339 = vld [vmem:[%s337 + $0x4] sm:$0xf]
        %v340 = vld [vmem:[%s337 + $0x8] sm:$0xf]
        %v341 = vld [vmem:[%s337 + $0xc] sm:$0xf]
        %v342 = vld [vmem:[%s337 + $0x10] sm:$0xf]
        %v343 = vld [vmem:[%s337 + $0x14] sm:$0xf]
        %v344 = vld [vmem:[%s337 + $0x18] sm:$0xf]
        %v345 = vld [vmem:[%s337 + $0x1c] sm:$0xf]
        %v346 = vld [vmem:[%s337 + $0x20] sm:$0xf]
        %v347 = vld [vmem:[%s337 + $0x24] sm:$0xf]
        %v348 = vld [vmem:[%s337 + $0x28] sm:$0xf]
        %v349 = vld [vmem:[%s337 + $0x2c] sm:$0xf]
        %v350 = vld [vmem:[%s337 + $0x30] sm:$0xf]
        %v351 = vld [vmem:[%s337 + $0x34] sm:$0xf]
        %v352 = vld [vmem:[%s337 + $0x38] sm:$0xf]
        %v353 = vld [vmem:[%s337 + $0x3c] sm:$0xf]
        %v354 = vld [vmem:[%s337 + $0x40] sm:$0xf]
        %v355 = vld [vmem:[%s337 + $0x44] sm:$0xf]
        %v356 = vld [vmem:[%s337 + $0x48] sm:$0xf]
        %v357 = vld [vmem:[%s337 + $0x4c] sm:$0xf]
        %v358 = vld [vmem:[%s337 + $0x50] sm:$0xf]
        %v359 = vld [vmem:[%s337 + $0x54] sm:$0xf]
        %v360 = vld [vmem:[%s337 + $0x58] sm:$0xf]
        %v361 = vld [vmem:[%s337 + $0x5c] sm:$0xf]
        %v362 = vld [vmem:[%s337 + $0x60] sm:$0xf]
        %v363 = vld [vmem:[%s337 + $0x64] sm:$0xf]
        %v364 = vld [vmem:[%s337 + $0x68] sm:$0xf]
        %v365 = vld [vmem:[%s337 + $0x6c] sm:$0xf]
        %v366 = vld [vmem:[%s337 + $0x70] sm:$0xf]
        %v367 = vld [vmem:[%s337 + $0x74] sm:$0xf]
        %v368 = vld [vmem:[%s337 + $0x78] sm:$0xf]
        %v369 = vld [vmem:[%s337 + $0x7c] sm:$0xf]
        %v370 = vld [vmem:[%s337 + $0x80] sm:$0xf]
        %v371 = vld [vmem:[%s337 + $0x84] sm:$0xf]
        %v372 = vld [vmem:[%s337 + $0x88] sm:$0xf]
        %v373 = vld [vmem:[%s337 + $0x8c] sm:$0xf]
        %v374 = vld [vmem:[%s337 + $0x90] sm:$0xf]
        %v375 = vld [vmem:[%s337 + $0x94] sm:$0xf]
        %v376 = vld [vmem:[%s337 + $0x98] sm:$0xf]
        %v377 = vld [vmem:[%s337 + $0x9c] sm:$0xf]
        %v378 = vld [vmem:[%s337 + $0xa0] sm:$0xf]
        %v379 = vld [vmem:[%s337 + $0xa4] sm:$0xf]
        %v380 = vld [vmem:[%s337 + $0xa8] sm:$0xf]
        %v381 = vld [vmem:[%s337 + $0xac] sm:$0xf]
        %v382 = vld [vmem:[%s337 + $0xb0] sm:$0xf]
        %v383 = vld [vmem:[%s337 + $0xb4] sm:$0xf]
        %v384 = vld [vmem:[%s337 + $0xb8] sm:$0xf]
        %v385 = vld [vmem:[%s337 + $0xbc] sm:$0xf]
        %v386 = vld [vmem:[%s337 + $0xc0] sm:$0xf]
        %v387 = vld [vmem:[%s337 + $0xc4] sm:$0xf]
        %v388 = vld [vmem:[%s337 + $0xc8] sm:$0xf]
        %v389 = vld [vmem:[%s337 + $0xcc] sm:$0xf]
        %v390 = vld [vmem:[%s337 + $0xd0] sm:$0xf]
        %v391 = vld [vmem:[%s337 + $0xd4] sm:$0xf]
        %v392 = vld [vmem:[%s337 + $0xd8] sm:$0xf]
        %v393 = vld [vmem:[%s337 + $0xdc] sm:$0xf]
        %v394 = vld [vmem:[%s337 + $0xe0] sm:$0xf]
        %v395 = vld [vmem:[%s337 + $0xe4] sm:$0xf]
        %v396 = vld [vmem:[%s337 + $0xe8] sm:$0xf]
        %v397 = vld [vmem:[%s337 + $0xec] sm:$0xf]
        %v398 = vld [vmem:[%s337 + $0xf0] sm:$0xf]
        %v399 = vld [vmem:[%s337 + $0xf4] sm:$0xf]
        %v400 = vld [vmem:[%s337 + $0xf8] sm:$0xf]
        %v401 = vld [vmem:[%s337 + $0xfc] sm:$0xf]
        %v402 = vld [vmem:[#allocation2] sm:$0xff]
        %v403 = vld [vmem:[#allocation2 + $0x8] sm:$0xff]
        %v404 = vld [vmem:[#allocation2 + $0x10] sm:$0xff]
        %v405 = vld [vmem:[#allocation2 + $0x18] sm:$0xff]
        %v406 = vld [vmem:[#allocation2 + $0x20] sm:$0xff]
        %v407 = vld [vmem:[#allocation2 + $0x28] sm:$0xff]
        %v408 = vld [vmem:[#allocation2 + $0x30] sm:$0xff]
        %v409 = vld [vmem:[#allocation2 + $0x38] sm:$0xff]
        %v410 = vld [vmem:[#allocation2 + $0x40] sm:$0xff]
        %v411 = vld [vmem:[#allocation2 + $0x48] sm:$0xff]
        %v412 = vld [vmem:[#allocation2 + $0x50] sm:$0xff]
        %v413 = vld [vmem:[#allocation2 + $0x58] sm:$0xff]
        %v414 = vld [vmem:[#allocation2 + $0x60] sm:$0xff]
        %v415 = vld [vmem:[#allocation2 + $0x68] sm:$0xff]
        %v416 = vld [vmem:[#allocation2 + $0x70] sm:$0xff]
        %v417 = vld [vmem:[#allocation2 + $0x78] sm:$0xff]
        %v418 = vld [vmem:[#allocation2 + $0x80] sm:$0xff]
        %v419 = vld [vmem:[#allocation2 + $0x88] sm:$0xff]
        %v420 = vld [vmem:[#allocation2 + $0x90] sm:$0xff]
        %v421 = vld [vmem:[#allocation2 + $0x98] sm:$0xff]
        %v422 = vld [vmem:[#allocation2 + $0xa0] sm:$0xff]
        %v423 = vld [vmem:[#allocation2 + $0xa8] sm:$0xff]
        %v424 = vld [vmem:[#allocation2 + $0xb0] sm:$0xff]
        %v425 = vld [vmem:[#allocation2 + $0xb8] sm:$0xff]
        %v426 = vld [vmem:[#allocation2 + $0xc0] sm:$0xff]
        %v427 = vld [vmem:[#allocation2 + $0xc8] sm:$0xff]
        %v428 = vld [vmem:[#allocation2 + $0xd0] sm:$0xff]
        %v429 = vld [vmem:[#allocation2 + $0xd8] sm:$0xff]
        %v430 = vld [vmem:[#allocation2 + $0xe0] sm:$0xff]
        %v431 = vld [vmem:[#allocation2 + $0xe8] sm:$0xff]
        %v432 = vld [vmem:[#allocation2 + $0xf0] sm:$0xff]
        %v433 = vld [vmem:[#allocation2 + $0xf8] sm:$0xff]
        %v434 = vld [vmem:[#allocation2 + $0x100] sm:$0xff]
        %v435 = vld [vmem:[#allocation2 + $0x108] sm:$0xff]
        %v436 = vld [vmem:[#allocation2 + $0x110] sm:$0xff]
        %v437 = vld [vmem:[#allocation2 + $0x118] sm:$0xff]
        %v438 = vld [vmem:[#allocation2 + $0x120] sm:$0xff]
        %v439 = vld [vmem:[#allocation2 + $0x128] sm:$0xff]
        %v440 = vld [vmem:[#allocation2 + $0x130] sm:$0xff]
        %v441 = vld [vmem:[#allocation2 + $0x138] sm:$0xff]
        %v442 = vld [vmem:[#allocation2 + $0x140] sm:$0xff]
        %v443 = vld [vmem:[#allocation2 + $0x148] sm:$0xff]
        %v444 = vld [vmem:[#allocation2 + $0x150] sm:$0xff]
        %v445 = vld [vmem:[#allocation2 + $0x158] sm:$0xff]
        %v446 = vld [vmem:[#allocation2 + $0x160] sm:$0xff]
        %v447 = vld [vmem:[#allocation2 + $0x168] sm:$0xff]
        %v448 = vld [vmem:[#allocation2 + $0x170] sm:$0xff]
        %v449 = vld [vmem:[#allocation2 + $0x178] sm:$0xff]
        %v450 = vld [vmem:[#allocation2 + $0x180] sm:$0xff]
        %v451 = vld [vmem:[#allocation2 + $0x188] sm:$0xff]
        %v452 = vld [vmem:[#allocation2 + $0x190] sm:$0xff]
        %v453 = vld [vmem:[#allocation2 + $0x198] sm:$0xff]
        %v454 = vld [vmem:[#allocation2 + $0x1a0] sm:$0xff]
        %v455 = vld [vmem:[#allocation2 + $0x1a8] sm:$0xff]
        %v456 = vld [vmem:[#allocation2 + $0x1b0] sm:$0xff]
        %v457 = vld [vmem:[#allocation2 + $0x1b8] sm:$0xff]
        %v458 = vld [vmem:[#allocation2 + $0x1c0] sm:$0xff]
        %v459 = vld [vmem:[#allocation2 + $0x1c8] sm:$0xff]
        %v460 = vld [vmem:[#allocation2 + $0x1d0] sm:$0xff]
        %v461 = vld [vmem:[#allocation2 + $0x1d8] sm:$0xff]
        %v462 = vld [vmem:[#allocation2 + $0x1e0] sm:$0xff]
        %v463 = vld [vmem:[#allocation2 + $0x1e8] sm:$0xff]
        %v464 = vld [vmem:[#allocation2 + $0x1f0] sm:$0xff]
        %v465 = vld [vmem:[#allocation2 + $0x1f8] sm:$0xff]
        %v466 = vld [vmem:[%s227] sm:$0xff]
        %v467 = vld [vmem:[%s227 + $0x8] sm:$0xff]
        %v468 = vld [vmem:[%s227 + $0x10] sm:$0xff]
        %v469 = vld [vmem:[%s227 + $0x18] sm:$0xff]
        %v470 = vld [vmem:[%s227 + $0x20] sm:$0xff]
        %v471 = vld [vmem:[%s227 + $0x28] sm:$0xff]
        %v472 = vld [vmem:[%s227 + $0x30] sm:$0xff]
        %v473 = vld [vmem:[%s227 + $0x38] sm:$0xff]
        %v474 = vld [vmem:[%s227 + $0x40] sm:$0xff]
        %v475 = vld [vmem:[%s227 + $0x48] sm:$0xff]
        %v476 = vld [vmem:[%s227 + $0x50] sm:$0xff]
        %v477 = vld [vmem:[%s227 + $0x58] sm:$0xff]
        %v478 = vld [vmem:[%s227 + $0x60] sm:$0xff]
        %v479 = vld [vmem:[%s227 + $0x68] sm:$0xff]
        %v480 = vld [vmem:[%s227 + $0x70] sm:$0xff]
        %v481 = vld [vmem:[%s227 + $0x78] sm:$0xff]
        %v482 = vld [vmem:[%s227 + $0x80] sm:$0xff]
        %v483 = vld [vmem:[%s227 + $0x88] sm:$0xff]
        %v484 = vld [vmem:[%s227 + $0x90] sm:$0xff]
        %v485 = vld [vmem:[%s227 + $0x98] sm:$0xff]
        %v486 = vld [vmem:[%s227 + $0xa0] sm:$0xff]
        %v487 = vld [vmem:[%s227 + $0xa8] sm:$0xff]
        %v488 = vld [vmem:[%s227 + $0xb0] sm:$0xff]
        %v489 = vld [vmem:[%s227 + $0xb8] sm:$0xff]
        %v490 = vld [vmem:[%s227 + $0xc0] sm:$0xff]
        %v491 = vld [vmem:[%s227 + $0xc8] sm:$0xff]
        %v492 = vld [vmem:[%s227 + $0xd0] sm:$0xff]
        %v493 = vld [vmem:[%s227 + $0xd8] sm:$0xff]
        %v494 = vld [vmem:[%s227 + $0xe0] sm:$0xff]
        %v495 = vld [vmem:[%s227 + $0xe8] sm:$0xff]
        %v496 = vld [vmem:[%s227 + $0xf0] sm:$0xff]
        %v497 = vld [vmem:[%s227 + $0xf8] sm:$0xff]
        %v498 = vld [vmem:[%s227 + $0x100] sm:$0xff]
        %v499 = vld [vmem:[%s227 + $0x108] sm:$0xff]
        %v500 = vld [vmem:[%s227 + $0x110] sm:$0xff]
        %v501 = vld [vmem:[%s227 + $0x118] sm:$0xff]
        %v502 = vld [vmem:[%s227 + $0x120] sm:$0xff]
        %v503 = vld [vmem:[%s227 + $0x128] sm:$0xff]
        %v504 = vld [vmem:[%s227 + $0x130] sm:$0xff]
        %v505 = vld [vmem:[%s227 + $0x138] sm:$0xff]
        %v506 = vld [vmem:[%s227 + $0x140] sm:$0xff]
        %v507 = vld [vmem:[%s227 + $0x148] sm:$0xff]
        %v508 = vld [vmem:[%s227 + $0x150] sm:$0xff]
        %v509 = vld [vmem:[%s227 + $0x158] sm:$0xff]
        %v510 = vld [vmem:[%s227 + $0x160] sm:$0xff]
        %v511 = vld [vmem:[%s227 + $0x168] sm:$0xff]
        %v512 = vld [vmem:[%s227 + $0x170] sm:$0xff]
        %v513 = vld [vmem:[%s227 + $0x178] sm:$0xff]
        %v514 = vld [vmem:[%s227 + $0x180] sm:$0xff]
        %v515 = vld [vmem:[%s227 + $0x188] sm:$0xff]
        %v516 = vld [vmem:[%s227 + $0x190] sm:$0xff]
        %v517 = vld [vmem:[%s227 + $0x198] sm:$0xff]
        %v518 = vld [vmem:[%s227 + $0x1a0] sm:$0xff]
        %v519 = vld [vmem:[%s227 + $0x1a8] sm:$0xff]
        %v520 = vld [vmem:[%s227 + $0x1b0] sm:$0xff]
        %v521 = vld [vmem:[%s227 + $0x1b8] sm:$0xff]
        %v522 = vld [vmem:[%s227 + $0x1c0] sm:$0xff]
        %v523 = vld [vmem:[%s227 + $0x1c8] sm:$0xff]
        %v524 = vld [vmem:[%s227 + $0x1d0] sm:$0xff]
        %v525 = vld [vmem:[%s227 + $0x1d8] sm:$0xff]
        %v526 = vld [vmem:[%s227 + $0x1e0] sm:$0xff]
        %v527 = vld [vmem:[%s227 + $0x1e8] sm:$0xff]
        %v528 = vld [vmem:[%s227 + $0x1f0] sm:$0xff]
        %v529 = vld [vmem:[%s227 + $0x1f8] sm:$0xff]
        %v530 = vld [vmem:[%s227 + $0x200] sm:$0xff]
        %v531 = vld [vmem:[%s227 + $0x208] sm:$0xff]
        %v532 = vld [vmem:[%s227 + $0x210] sm:$0xff]
        %v533 = vld [vmem:[%s227 + $0x218] sm:$0xff]
        %v534 = vld [vmem:[%s227 + $0x220] sm:$0xff]
        %v535 = vld [vmem:[%s227 + $0x228] sm:$0xff]
        %v536 = vld [vmem:[%s227 + $0x230] sm:$0xff]
        %v537 = vld [vmem:[%s227 + $0x238] sm:$0xff]
        %v538 = vld [vmem:[%s227 + $0x240] sm:$0xff]
        %v539 = vld [vmem:[%s227 + $0x248] sm:$0xff]
        %v540 = vld [vmem:[%s227 + $0x250] sm:$0xff]
        %v541 = vld [vmem:[%s227 + $0x258] sm:$0xff]
        %v542 = vld [vmem:[%s227 + $0x260] sm:$0xff]
        %v543 = vld [vmem:[%s227 + $0x268] sm:$0xff]
        %v544 = vld [vmem:[%s227 + $0x270] sm:$0xff]
        %v545 = vld [vmem:[%s227 + $0x278] sm:$0xff]
        %v546 = vld [vmem:[%s227 + $0x280] sm:$0xff]
        %v547 = vld [vmem:[%s227 + $0x288] sm:$0xff]
        %v548 = vld [vmem:[%s227 + $0x290] sm:$0xff]
        %v549 = vld [vmem:[%s227 + $0x298] sm:$0xff]
        %v550 = vld [vmem:[%s227 + $0x2a0] sm:$0xff]
        %v551 = vld [vmem:[%s227 + $0x2a8] sm:$0xff]
        %v552 = vld [vmem:[%s227 + $0x2b0] sm:$0xff]
        %v553 = vld [vmem:[%s227 + $0x2b8] sm:$0xff]
        %v554 = vld [vmem:[%s227 + $0x2c0] sm:$0xff]
        %v555 = vld [vmem:[%s227 + $0x2c8] sm:$0xff]
        %v556 = vld [vmem:[%s227 + $0x2d0] sm:$0xff]
        %v557 = vld [vmem:[%s227 + $0x2d8] sm:$0xff]
        %v558 = vld [vmem:[%s227 + $0x2e0] sm:$0xff]
        %v559 = vld [vmem:[%s227 + $0x2e8] sm:$0xff]
        %v560 = vld [vmem:[%s227 + $0x2f0] sm:$0xff]
        %v561 = vld [vmem:[%s227 + $0x2f8] sm:$0xff]
        %v562 = vld [vmem:[%s227 + $0x300] sm:$0xff]
        %v563 = vld [vmem:[%s227 + $0x308] sm:$0xff]
        %v564 = vld [vmem:[%s227 + $0x310] sm:$0xff]
        %v565 = vld [vmem:[%s227 + $0x318] sm:$0xff]
        %v566 = vld [vmem:[%s227 + $0x320] sm:$0xff]
        %v567 = vld [vmem:[%s227 + $0x328] sm:$0xff]
        %v568 = vld [vmem:[%s227 + $0x330] sm:$0xff]
        %v569 = vld [vmem:[%s227 + $0x338] sm:$0xff]
        %v570 = vld [vmem:[%s227 + $0x340] sm:$0xff]
        %v571 = vld [vmem:[%s227 + $0x348] sm:$0xff]
        %v572 = vld [vmem:[%s227 + $0x350] sm:$0xff]
        %v573 = vld [vmem:[%s227 + $0x358] sm:$0xff]
        %v574 = vld [vmem:[%s227 + $0x360] sm:$0xff]
        %v575 = vld [vmem:[%s227 + $0x368] sm:$0xff]
        %v576 = vld [vmem:[%s227 + $0x370] sm:$0xff]
        %v577 = vld [vmem:[%s227 + $0x378] sm:$0xff]
        %v578 = vld [vmem:[%s227 + $0x380] sm:$0xff]
        %v579 = vld [vmem:[%s227 + $0x388] sm:$0xff]
        %v580 = vld [vmem:[%s227 + $0x390] sm:$0xff]
        %v581 = vld [vmem:[%s227 + $0x398] sm:$0xff]
        %v582 = vld [vmem:[%s227 + $0x3a0] sm:$0xff]
        %v583 = vld [vmem:[%s227 + $0x3a8] sm:$0xff]
        %v584 = vld [vmem:[%s227 + $0x3b0] sm:$0xff]
        %v585 = vld [vmem:[%s227 + $0x3b8] sm:$0xff]
        %v586 = vld [vmem:[%s227 + $0x3c0] sm:$0xff]
        %v587 = vld [vmem:[%s227 + $0x3c8] sm:$0xff]
        %v588 = vld [vmem:[%s227 + $0x3d0] sm:$0xff]
        %v589 = vld [vmem:[%s227 + $0x3d8] sm:$0xff]
        %v590 = vld [vmem:[%s227 + $0x3e0] sm:$0xff]
        %v591 = vld [vmem:[%s227 + $0x3e8] sm:$0xff]
        %v592 = vld [vmem:[%s227 + $0x3f0] sm:$0xff]
        %v593 = vld [vmem:[%s227 + $0x3f8] sm:$0xff]
        %v722 = vunpack.c.l.b16 %v466
        %v723 = vunpack.c.h.b16 %v466
        %v724 = vunpack.c.l.b16 %v467
        %v725 = vunpack.c.h.b16 %v467
        %v726 = vunpack.c.l.b16 %v468
        %v727 = vunpack.c.h.b16 %v468
        %v728 = vunpack.c.l.b16 %v469
        %v729 = vunpack.c.h.b16 %v469
        %v730 = vunpack.c.l.b16 %v470
        %v731 = vunpack.c.h.b16 %v470
        %v732 = vunpack.c.l.b16 %v471
        %v733 = vunpack.c.h.b16 %v471
        %v734 = vunpack.c.l.b16 %v472
        %v735 = vunpack.c.h.b16 %v472
        %v736 = vunpack.c.l.b16 %v473
        %v737 = vunpack.c.h.b16 %v473
        %v738 = vunpack.c.l.b16 %v474
        %v739 = vunpack.c.h.b16 %v474
        %v740 = vunpack.c.l.b16 %v475
        %v741 = vunpack.c.h.b16 %v475
        %v742 = vunpack.c.l.b16 %v476
        %v743 = vunpack.c.h.b16 %v476
        %v744 = vunpack.c.l.b16 %v477
        %v745 = vunpack.c.h.b16 %v477
        %v746 = vunpack.c.l.b16 %v478
        %v747 = vunpack.c.h.b16 %v478
        %v748 = vunpack.c.l.b16 %v479
        %v749 = vunpack.c.h.b16 %v479
        %v750 = vunpack.c.l.b16 %v480
        %v751 = vunpack.c.h.b16 %v480
        %v752 = vunpack.c.l.b16 %v481
        %v753 = vunpack.c.h.b16 %v481
        %v754 = vunpack.c.l.b16 %v482
        %v755 = vunpack.c.h.b16 %v482
        %v756 = vunpack.c.l.b16 %v483
        %v757 = vunpack.c.h.b16 %v483
        %v758 = vunpack.c.l.b16 %v484
        %v759 = vunpack.c.h.b16 %v484
        %v760 = vunpack.c.l.b16 %v485
        %v761 = vunpack.c.h.b16 %v485
        %v762 = vunpack.c.l.b16 %v486
        %v763 = vunpack.c.h.b16 %v486
        %v764 = vunpack.c.l.b16 %v487
        %v765 = vunpack.c.h.b16 %v487
        %v766 = vunpack.c.l.b16 %v488
        %v767 = vunpack.c.h.b16 %v488
        %v768 = vunpack.c.l.b16 %v489
        %v769 = vunpack.c.h.b16 %v489
        %v770 = vunpack.c.l.b16 %v490
        %v771 = vunpack.c.h.b16 %v490
        %v772 = vunpack.c.l.b16 %v491
        %v773 = vunpack.c.h.b16 %v491
        %v774 = vunpack.c.l.b16 %v492
        %v775 = vunpack.c.h.b16 %v492
        %v776 = vunpack.c.l.b16 %v493
        %v777 = vunpack.c.h.b16 %v493
        %v778 = vunpack.c.l.b16 %v494
        %v779 = vunpack.c.h.b16 %v494
        %v780 = vunpack.c.l.b16 %v495
        %v781 = vunpack.c.h.b16 %v495
        %v782 = vunpack.c.l.b16 %v496
        %v783 = vunpack.c.h.b16 %v496
        %v784 = vunpack.c.l.b16 %v497
        %v785 = vunpack.c.h.b16 %v497
        %v786 = vunpack.c.l.b16 %v498
        %v787 = vunpack.c.h.b16 %v498
        %v788 = vunpack.c.l.b16 %v499
        %v789 = vunpack.c.h.b16 %v499
        %v790 = vunpack.c.l.b16 %v500
        %v791 = vunpack.c.h.b16 %v500
        %v792 = vunpack.c.l.b16 %v501
        %v793 = vunpack.c.h.b16 %v501
        %v794 = vunpack.c.l.b16 %v502
        %v795 = vunpack.c.h.b16 %v502
        %v796 = vunpack.c.l.b16 %v503
        %v797 = vunpack.c.h.b16 %v503
        %v798 = vunpack.c.l.b16 %v504
        %v799 = vunpack.c.h.b16 %v504
        %v800 = vunpack.c.l.b16 %v505
        %v801 = vunpack.c.h.b16 %v505
        %v802 = vunpack.c.l.b16 %v506
        %v803 = vunpack.c.h.b16 %v506
        %v804 = vunpack.c.l.b16 %v507
        %v805 = vunpack.c.h.b16 %v507
        %v806 = vunpack.c.l.b16 %v508
        %v807 = vunpack.c.h.b16 %v508
        %v808 = vunpack.c.l.b16 %v509
        %v809 = vunpack.c.h.b16 %v509
        %v810 = vunpack.c.l.b16 %v510
        %v811 = vunpack.c.h.b16 %v510
        %v812 = vunpack.c.l.b16 %v511
        %v813 = vunpack.c.h.b16 %v511
        %v814 = vunpack.c.l.b16 %v512
        %v815 = vunpack.c.h.b16 %v512
        %v816 = vunpack.c.l.b16 %v513
        %v817 = vunpack.c.h.b16 %v513
        %v818 = vunpack.c.l.b16 %v514
        %v819 = vunpack.c.h.b16 %v514
        %v820 = vunpack.c.l.b16 %v515
        %v821 = vunpack.c.h.b16 %v515
        %v822 = vunpack.c.l.b16 %v516
        %v823 = vunpack.c.h.b16 %v516
        %v824 = vunpack.c.l.b16 %v517
        %v825 = vunpack.c.h.b16 %v517
        %v826 = vunpack.c.l.b16 %v518
        %v827 = vunpack.c.h.b16 %v518
        %v828 = vunpack.c.l.b16 %v519
        %v829 = vunpack.c.h.b16 %v519
        %v830 = vunpack.c.l.b16 %v520
        %v831 = vunpack.c.h.b16 %v520
        %v832 = vunpack.c.l.b16 %v521
        %v833 = vunpack.c.h.b16 %v521
        %v834 = vunpack.c.l.b16 %v522
        %v835 = vunpack.c.h.b16 %v522
        %v836 = vunpack.c.l.b16 %v523
        %v837 = vunpack.c.h.b16 %v523
        %v838 = vunpack.c.l.b16 %v524
        %v839 = vunpack.c.h.b16 %v524
        %v840 = vunpack.c.l.b16 %v525
        %v841 = vunpack.c.h.b16 %v525
        %v842 = vunpack.c.l.b16 %v526
        %v843 = vunpack.c.h.b16 %v526
        %v844 = vunpack.c.l.b16 %v527
        %v845 = vunpack.c.h.b16 %v527
        %v846 = vunpack.c.l.b16 %v528
        %v847 = vunpack.c.h.b16 %v528
        %v848 = vunpack.c.l.b16 %v529
        %v849 = vunpack.c.h.b16 %v529
        %v850 = vunpack.c.l.b16 %v530
        %v851 = vunpack.c.h.b16 %v530
        %v852 = vunpack.c.l.b16 %v531
        %v853 = vunpack.c.h.b16 %v531
        %v854 = vunpack.c.l.b16 %v532
        %v855 = vunpack.c.h.b16 %v532
        %v856 = vunpack.c.l.b16 %v533
        %v857 = vunpack.c.h.b16 %v533
        %v858 = vunpack.c.l.b16 %v534
        %v859 = vunpack.c.h.b16 %v534
        %v860 = vunpack.c.l.b16 %v535
        %v861 = vunpack.c.h.b16 %v535
        %v862 = vunpack.c.l.b16 %v536
        %v863 = vunpack.c.h.b16 %v536
        %v864 = vunpack.c.l.b16 %v537
        %v865 = vunpack.c.h.b16 %v537
        %v866 = vunpack.c.l.b16 %v538
        %v867 = vunpack.c.h.b16 %v538
        %v868 = vunpack.c.l.b16 %v539
        %v869 = vunpack.c.h.b16 %v539
        %v870 = vunpack.c.l.b16 %v540
        %v871 = vunpack.c.h.b16 %v540
        %v872 = vunpack.c.l.b16 %v541
        %v873 = vunpack.c.h.b16 %v541
        %v874 = vunpack.c.l.b16 %v542
        %v875 = vunpack.c.h.b16 %v542
        %v876 = vunpack.c.l.b16 %v543
        %v877 = vunpack.c.h.b16 %v543
        %v878 = vunpack.c.l.b16 %v544
        %v879 = vunpack.c.h.b16 %v544
        %v880 = vunpack.c.l.b16 %v545
        %v881 = vunpack.c.h.b16 %v545
        %v882 = vunpack.c.l.b16 %v546
        %v883 = vunpack.c.h.b16 %v546
        %v884 = vunpack.c.l.b16 %v547
        %v885 = vunpack.c.h.b16 %v547
        %v886 = vunpack.c.l.b16 %v548
        %v887 = vunpack.c.h.b16 %v548
        %v888 = vunpack.c.l.b16 %v549
        %v889 = vunpack.c.h.b16 %v549
        %v890 = vunpack.c.l.b16 %v550
        %v891 = vunpack.c.h.b16 %v550
        %v892 = vunpack.c.l.b16 %v551
        %v893 = vunpack.c.h.b16 %v551
        %v894 = vunpack.c.l.b16 %v552
        %v895 = vunpack.c.h.b16 %v552
        %v896 = vunpack.c.l.b16 %v553
        %v897 = vunpack.c.h.b16 %v553
        %v898 = vunpack.c.l.b16 %v554
        %v899 = vunpack.c.h.b16 %v554
        %v900 = vunpack.c.l.b16 %v555
        %v901 = vunpack.c.h.b16 %v555
        %v902 = vunpack.c.l.b16 %v556
        %v903 = vunpack.c.h.b16 %v556
        %v904 = vunpack.c.l.b16 %v557
        %v905 = vunpack.c.h.b16 %v557
        %v906 = vunpack.c.l.b16 %v558
        %v907 = vunpack.c.h.b16 %v558
        %v908 = vunpack.c.l.b16 %v559
        %v909 = vunpack.c.h.b16 %v559
        %v910 = vunpack.c.l.b16 %v560
        %v911 = vunpack.c.h.b16 %v560
        %v912 = vunpack.c.l.b16 %v561
        %v913 = vunpack.c.h.b16 %v561
        %v914 = vunpack.c.l.b16 %v562
        %v915 = vunpack.c.h.b16 %v562
        %v916 = vunpack.c.l.b16 %v563
        %v917 = vunpack.c.h.b16 %v563
        %v918 = vunpack.c.l.b16 %v564
        %v919 = vunpack.c.h.b16 %v564
        %v920 = vunpack.c.l.b16 %v565
        %v921 = vunpack.c.h.b16 %v565
        %v922 = vunpack.c.l.b16 %v566
        %v923 = vunpack.c.h.b16 %v566
        %v924 = vunpack.c.l.b16 %v567
        %v925 = vunpack.c.h.b16 %v567
        %v926 = vunpack.c.l.b16 %v568
        %v927 = vunpack.c.h.b16 %v568
        %v928 = vunpack.c.l.b16 %v569
        %v929 = vunpack.c.h.b16 %v569
        %v930 = vunpack.c.l.b16 %v570
        %v931 = vunpack.c.h.b16 %v570
        %v932 = vunpack.c.l.b16 %v571
        %v933 = vunpack.c.h.b16 %v571
        %v934 = vunpack.c.l.b16 %v572
        %v935 = vunpack.c.h.b16 %v572
        %v936 = vunpack.c.l.b16 %v573
        %v937 = vunpack.c.h.b16 %v573
        %v938 = vunpack.c.l.b16 %v574
        %v939 = vunpack.c.h.b16 %v574
        %v940 = vunpack.c.l.b16 %v575
        %v941 = vunpack.c.h.b16 %v575
        %v942 = vunpack.c.l.b16 %v576
        %v943 = vunpack.c.h.b16 %v576
        %v944 = vunpack.c.l.b16 %v577
        %v945 = vunpack.c.h.b16 %v577
        %v946 = vunpack.c.l.b16 %v578
        %v947 = vunpack.c.h.b16 %v578
        %v948 = vunpack.c.l.b16 %v579
        %v949 = vunpack.c.h.b16 %v579
        %v950 = vunpack.c.l.b16 %v580
        %v951 = vunpack.c.h.b16 %v580
        %v952 = vunpack.c.l.b16 %v581
        %v953 = vunpack.c.h.b16 %v581
        %v954 = vunpack.c.l.b16 %v582
        %v955 = vunpack.c.h.b16 %v582
        %v956 = vunpack.c.l.b16 %v583
        %v957 = vunpack.c.h.b16 %v583
        %v958 = vunpack.c.l.b16 %v584
        %v959 = vunpack.c.h.b16 %v584
        %v960 = vunpack.c.l.b16 %v585
        %v961 = vunpack.c.h.b16 %v585
        %v962 = vunpack.c.l.b16 %v586
        %v963 = vunpack.c.h.b16 %v586
        %v964 = vunpack.c.l.b16 %v587
        %v965 = vunpack.c.h.b16 %v587
        %v966 = vunpack.c.l.b16 %v588
        %v967 = vunpack.c.h.b16 %v588
        %v968 = vunpack.c.l.b16 %v589
        %v969 = vunpack.c.h.b16 %v589
        %v970 = vunpack.c.l.b16 %v590
        %v971 = vunpack.c.h.b16 %v590
        %v972 = vunpack.c.l.b16 %v591
        %v973 = vunpack.c.h.b16 %v591
        %v974 = vunpack.c.l.b16 %v592
        %v975 = vunpack.c.h.b16 %v592
        %v976 = vunpack.c.l.b16 %v593
        %v977 = vunpack.c.h.b16 %v593
        %v978 = vpack.c.b16 %v726, %v722
        %v979 = vpack.c.b16 %v727, %v723
        %v980 = vpack.c.b16 %v728, %v724
        %v981 = vpack.c.b16 %v729, %v725
        %v982 = vpack.c.b16 %v734, %v730
        %v983 = vpack.c.b16 %v735, %v731
        %v984 = vpack.c.b16 %v736, %v732
        %v985 = vpack.c.b16 %v737, %v733
        %v986 = vpack.c.b16 %v742, %v738
        %v987 = vpack.c.b16 %v743, %v739
        %v988 = vpack.c.b16 %v744, %v740
        %v989 = vpack.c.b16 %v745, %v741
        %v990 = vpack.c.b16 %v750, %v746
        %v991 = vpack.c.b16 %v751, %v747
        %v992 = vpack.c.b16 %v752, %v748
        %v993 = vpack.c.b16 %v753, %v749
        %v994 = vpack.c.b16 %v758, %v754
        %v995 = vpack.c.b16 %v759, %v755
        %v996 = vpack.c.b16 %v760, %v756
        %v997 = vpack.c.b16 %v761, %v757
        %v998 = vpack.c.b16 %v766, %v762
        %v999 = vpack.c.b16 %v767, %v763
        %v1000 = vpack.c.b16 %v768, %v764
        %v1001 = vpack.c.b16 %v769, %v765
        %v1002 = vpack.c.b16 %v774, %v770
        %v1003 = vpack.c.b16 %v775, %v771
        %v1004 = vpack.c.b16 %v776, %v772
        %v1005 = vpack.c.b16 %v777, %v773
        %v1006 = vpack.c.b16 %v782, %v778
        %v1007 = vpack.c.b16 %v783, %v779
        %v1008 = vpack.c.b16 %v784, %v780
        %v1009 = vpack.c.b16 %v785, %v781
        %v1010 = vpack.c.b16 %v790, %v786
        %v1011 = vpack.c.b16 %v791, %v787
        %v1012 = vpack.c.b16 %v792, %v788
        %v1013 = vpack.c.b16 %v793, %v789
        %v1014 = vpack.c.b16 %v798, %v794
        %v1015 = vpack.c.b16 %v799, %v795
        %v1016 = vpack.c.b16 %v800, %v796
        %v1017 = vpack.c.b16 %v801, %v797
        %v1018 = vpack.c.b16 %v806, %v802
        %v1019 = vpack.c.b16 %v807, %v803
        %v1020 = vpack.c.b16 %v808, %v804
        %v1021 = vpack.c.b16 %v809, %v805
        %v1022 = vpack.c.b16 %v814, %v810
        %v1023 = vpack.c.b16 %v815, %v811
        %v1024 = vpack.c.b16 %v816, %v812
        %v1025 = vpack.c.b16 %v817, %v813
        %v1026 = vpack.c.b16 %v822, %v818
        %v1027 = vpack.c.b16 %v823, %v819
        %v1028 = vpack.c.b16 %v824, %v820
        %v1029 = vpack.c.b16 %v825, %v821
        %v1030 = vpack.c.b16 %v830, %v826
        %v1031 = vpack.c.b16 %v831, %v827
        %v1032 = vpack.c.b16 %v832, %v828
        %v1033 = vpack.c.b16 %v833, %v829
        %v1034 = vpack.c.b16 %v838, %v834
        %v1035 = vpack.c.b16 %v839, %v835
        %v1036 = vpack.c.b16 %v840, %v836
        %v1037 = vpack.c.b16 %v841, %v837
        %v1038 = vpack.c.b16 %v846, %v842
        %v1039 = vpack.c.b16 %v847, %v843
        %v1040 = vpack.c.b16 %v848, %v844
        %v1041 = vpack.c.b16 %v849, %v845
        %v1042 = vpack.c.b16 %v854, %v850
        %v1043 = vpack.c.b16 %v855, %v851
        %v1044 = vpack.c.b16 %v856, %v852
        %v1045 = vpack.c.b16 %v857, %v853
        %v1046 = vpack.c.b16 %v862, %v858
        %v1047 = vpack.c.b16 %v863, %v859
        %v1048 = vpack.c.b16 %v864, %v860
        %v1049 = vpack.c.b16 %v865, %v861
        %v1050 = vpack.c.b16 %v870, %v866
        %v1051 = vpack.c.b16 %v871, %v867
        %v1052 = vpack.c.b16 %v872, %v868
        %v1053 = vpack.c.b16 %v873, %v869
        %v1054 = vpack.c.b16 %v878, %v874
        %v1055 = vpack.c.b16 %v879, %v875
        %v1056 = vpack.c.b16 %v880, %v876
        %v1057 = vpack.c.b16 %v881, %v877
        %v1058 = vpack.c.b16 %v886, %v882
        %v1059 = vpack.c.b16 %v887, %v883
        %v1060 = vpack.c.b16 %v888, %v884
        %v1061 = vpack.c.b16 %v889, %v885
        %v1062 = vpack.c.b16 %v894, %v890
        %v1063 = vpack.c.b16 %v895, %v891
        %v1064 = vpack.c.b16 %v896, %v892
        %v1065 = vpack.c.b16 %v897, %v893
        %v1066 = vpack.c.b16 %v902, %v898
        %v1067 = vpack.c.b16 %v903, %v899
        %v1068 = vpack.c.b16 %v904, %v900
        %v1069 = vpack.c.b16 %v905, %v901
        %v1070 = vpack.c.b16 %v910, %v906
        %v1071 = vpack.c.b16 %v911, %v907
        %v1072 = vpack.c.b16 %v912, %v908
        %v1073 = vpack.c.b16 %v913, %v909
        %v1074 = vpack.c.b16 %v918, %v914
        %v1075 = vpack.c.b16 %v919, %v915
        %v1076 = vpack.c.b16 %v920, %v916
        %v1077 = vpack.c.b16 %v921, %v917
        %v1078 = vpack.c.b16 %v926, %v922
        %v1079 = vpack.c.b16 %v927, %v923
        %v1080 = vpack.c.b16 %v928, %v924
        %v1081 = vpack.c.b16 %v929, %v925
        %v1082 = vpack.c.b16 %v934, %v930
        %v1083 = vpack.c.b16 %v935, %v931
        %v1084 = vpack.c.b16 %v936, %v932
        %v1085 = vpack.c.b16 %v937, %v933
        %v1086 = vpack.c.b16 %v942, %v938
        %v1087 = vpack.c.b16 %v943, %v939
        %v1088 = vpack.c.b16 %v944, %v940
        %v1089 = vpack.c.b16 %v945, %v941
        %v1090 = vpack.c.b16 %v950, %v946
        %v1091 = vpack.c.b16 %v951, %v947
        %v1092 = vpack.c.b16 %v952, %v948
        %v1093 = vpack.c.b16 %v953, %v949
        %v1094 = vpack.c.b16 %v958, %v954
        %v1095 = vpack.c.b16 %v959, %v955
        %v1096 = vpack.c.b16 %v960, %v956
        %v1097 = vpack.c.b16 %v961, %v957
        %v1098 = vpack.c.b16 %v966, %v962
        %v1099 = vpack.c.b16 %v967, %v963
        %v1100 = vpack.c.b16 %v968, %v964
        %v1101 = vpack.c.b16 %v969, %v965
        %v1102 = vpack.c.b16 %v974, %v970
        %v1103 = vpack.c.b16 %v975, %v971
        %v1104 = vpack.c.b16 %v976, %v972
        %v1105 = vpack.c.b16 %v977, %v973
        %v1298 = vunpack.c.l.b16 %v338
        %v1299 = vunpack.c.l.b16 %v339
        %v1300 = vunpack.c.l.b16 %v340
        %v1301 = vunpack.c.l.b16 %v341
        %v1302 = vunpack.c.l.b16 %v342
        %v1303 = vunpack.c.l.b16 %v343
        %v1304 = vunpack.c.l.b16 %v344
        %v1305 = vunpack.c.l.b16 %v345
        %v1306 = vunpack.c.l.b16 %v346
        %v1307 = vunpack.c.l.b16 %v347
        %v1308 = vunpack.c.l.b16 %v348
        %v1309 = vunpack.c.l.b16 %v349
        %v1310 = vunpack.c.l.b16 %v350
        %v1311 = vunpack.c.l.b16 %v351
        %v1312 = vunpack.c.l.b16 %v352
        %v1313 = vunpack.c.l.b16 %v353
        %v1314 = vunpack.c.l.b16 %v354
        %v1315 = vunpack.c.l.b16 %v355
        %v1316 = vunpack.c.l.b16 %v356
        %v1317 = vunpack.c.l.b16 %v357
        %v1318 = vunpack.c.l.b16 %v358
        %v1319 = vunpack.c.l.b16 %v359
        %v1320 = vunpack.c.l.b16 %v360
        %v1321 = vunpack.c.l.b16 %v361
        %v1322 = vunpack.c.l.b16 %v362
        %v1323 = vunpack.c.l.b16 %v363
        %v1324 = vunpack.c.l.b16 %v364
        %v1325 = vunpack.c.l.b16 %v365
        %v1326 = vunpack.c.l.b16 %v366
        %v1327 = vunpack.c.l.b16 %v367
        %v1328 = vunpack.c.l.b16 %v368
        %v1329 = vunpack.c.l.b16 %v369
        %v1330 = vunpack.c.l.b16 %v370
        %v1331 = vunpack.c.l.b16 %v371
        %v1332 = vunpack.c.l.b16 %v372
        %v1333 = vunpack.c.l.b16 %v373
        %v1334 = vunpack.c.l.b16 %v374
        %v1335 = vunpack.c.l.b16 %v375
        %v1336 = vunpack.c.l.b16 %v376
        %v1337 = vunpack.c.l.b16 %v377
        %v1338 = vunpack.c.l.b16 %v378
        %v1339 = vunpack.c.l.b16 %v379
        %v1340 = vunpack.c.l.b16 %v380
        %v1341 = vunpack.c.l.b16 %v381
        %v1342 = vunpack.c.l.b16 %v382
        %v1343 = vunpack.c.l.b16 %v383
        %v1344 = vunpack.c.l.b16 %v384
        %v1345 = vunpack.c.l.b16 %v385
        %v1346 = vunpack.c.l.b16 %v386
        %v1347 = vunpack.c.l.b16 %v387
        %v1348 = vunpack.c.l.b16 %v388
        %v1349 = vunpack.c.l.b16 %v389
        %v1350 = vunpack.c.l.b16 %v390
        %v1351 = vunpack.c.l.b16 %v391
        %v1352 = vunpack.c.l.b16 %v392
        %v1353 = vunpack.c.l.b16 %v393
        %v1354 = vunpack.c.l.b16 %v394
        %v1355 = vunpack.c.l.b16 %v395
        %v1356 = vunpack.c.l.b16 %v396
        %v1357 = vunpack.c.l.b16 %v397
        %v1358 = vunpack.c.l.b16 %v398
        %v1359 = vunpack.c.l.b16 %v399
        %v1360 = vunpack.c.l.b16 %v400
        %v1361 = vunpack.c.l.b16 %v401
        %v1362 = vpack.c.b16 %v1299, %v1298
        %v1363 = vpack.c.b16 %v1301, %v1300
        %v1364 = vpack.c.b16 %v1303, %v1302
        %v1365 = vpack.c.b16 %v1305, %v1304
        %v1366 = vpack.c.b16 %v1307, %v1306
        %v1367 = vpack.c.b16 %v1309, %v1308
        %v1368 = vpack.c.b16 %v1311, %v1310
        %v1369 = vpack.c.b16 %v1313, %v1312
        %v1370 = vpack.c.b16 %v1315, %v1314
        %v1371 = vpack.c.b16 %v1317, %v1316
        %v1372 = vpack.c.b16 %v1319, %v1318
        %v1373 = vpack.c.b16 %v1321, %v1320
        %v1374 = vpack.c.b16 %v1323, %v1322
        %v1375 = vpack.c.b16 %v1325, %v1324
        %v1376 = vpack.c.b16 %v1327, %v1326
        %v1377 = vpack.c.b16 %v1329, %v1328
        %v1378 = vpack.c.b16 %v1331, %v1330
        %v1379 = vpack.c.b16 %v1333, %v1332
        %v1380 = vpack.c.b16 %v1335, %v1334
        %v1381 = vpack.c.b16 %v1337, %v1336
        %v1382 = vpack.c.b16 %v1339, %v1338
        %v1383 = vpack.c.b16 %v1341, %v1340
        %v1384 = vpack.c.b16 %v1343, %v1342
        %v1385 = vpack.c.b16 %v1345, %v1344
        %v1386 = vpack.c.b16 %v1347, %v1346
        %v1387 = vpack.c.b16 %v1349, %v1348
        %v1388 = vpack.c.b16 %v1351, %v1350
        %v1389 = vpack.c.b16 %v1353, %v1352
        %v1390 = vpack.c.b16 %v1355, %v1354
        %v1391 = vpack.c.b16 %v1357, %v1356
        %v1392 = vpack.c.b16 %v1359, %v1358
        %v1393 = vpack.c.b16 %v1361, %v1360
        %1426 = vmatprep.subr.bf16.mxu0 0
        %1427 = vmatpush1.bf16.msra.mxu0 %v1362
        %1428 = vmatprep.subr.bf16.mxu0 0
        %1429 = vmatpush1.bf16.msra.mxu0 %v1363
        %1430 = vmatprep.subr.bf16.mxu0 0
        %1431 = vmatpush1.bf16.msra.mxu0 %v1364
        %1432 = vmatprep.subr.bf16.mxu0 0
        %1433 = vmatpush1.bf16.msra.mxu0 %v1365
        %1434 = vmatprep.subr.bf16.mxu0 0
        %1435 = vmatpush1.bf16.msra.mxu0 %v1366
        %1436 = vmatprep.subr.bf16.mxu0 0
        %1437 = vmatpush1.bf16.msra.mxu0 %v1367
        %1438 = vmatprep.subr.bf16.mxu0 0
        %1439 = vmatpush1.bf16.msra.mxu0 %v1368
        %1440 = vmatprep.subr.bf16.mxu0 0
        %1441 = vmatpush1.bf16.msra.mxu0 %v1369
        %1442 = vmatprep.subr.bf16.mxu0 0
        %1443 = vmatpush1.bf16.msra.mxu0 %v1370
        %1444 = vmatprep.subr.bf16.mxu0 0
        %1445 = vmatpush1.bf16.msra.mxu0 %v1371
        %1446 = vmatprep.subr.bf16.mxu0 0
        %1447 = vmatpush1.bf16.msra.mxu0 %v1372
        %1448 = vmatprep.subr.bf16.mxu0 0
        %1449 = vmatpush1.bf16.msra.mxu0 %v1373
        %1450 = vmatprep.subr.bf16.mxu0 0
        %1451 = vmatpush1.bf16.msra.mxu0 %v1374
        %1452 = vmatprep.subr.bf16.mxu0 0
        %1453 = vmatpush1.bf16.msra.mxu0 %v1375
        %1454 = vmatprep.subr.bf16.mxu0 0
        %1455 = vmatpush1.bf16.msra.mxu0 %v1376
        %1456 = vmatprep.subr.bf16.mxu0 0
        %1457 = vmatpush1.bf16.msra.mxu0 %v1377
        %1458 = vmatprep.mubr.bf16.mxu0 %v979
        %1459 = vmatmul.mubr.bf16.gmra.mrb[0].mxu0 %v978
        %v1460 = vpop.f32.mrb[0].mxu0
        %v1461 = vadd.f32 0.0, %v1460
        %v1462 = vpop.f32.mrb[0].mxu0
        %v1463 = vpop.f32.mrb[0].mxu0
        %v1464 = vadd.f32 0.0, %v1463
        %v1465 = vpop.f32.mrb[0].mxu0
        %1466 = vmatprep.mubr.bf16.mxu0 %v983
        %1467 = vmatmul.mubr.bf16.gmra.mrb[0].mxu0 %v982
        %v1468 = vpop.f32.mrb[0].mxu0
        %v1469 = vadd.f32 0.0, %v1468
        %v1470 = vpop.f32.mrb[0].mxu0
        %v1471 = vpop.f32.mrb[0].mxu0
        %v1472 = vadd.f32 0.0, %v1471
        %v1473 = vpop.f32.mrb[0].mxu0
        %1474 = vmatprep.mubr.bf16.mxu0 %v987
        %1475 = vmatmul.mubr.bf16.gmra.mrb[0].mxu0 %v986
        %v1476 = vpop.f32.mrb[0].mxu0
        %v1477 = vadd.f32 0.0, %v1476
        %v1478 = vpop.f32.mrb[0].mxu0
        %v1479 = vpop.f32.mrb[0].mxu0
        %v1480 = vadd.f32 0.0, %v1479
        %v1481 = vpop.f32.mrb[0].mxu0
        %1482 = vmatprep.mubr.bf16.mxu0 %v991
        %1483 = vmatmul.mubr.bf16.gmra.mrb[0].mxu0 %v990
        %v1484 = vpop.f32.mrb[0].mxu0
        %v1485 = vadd.f32 0.0, %v1484
        %v1486 = vpop.f32.mrb[0].mxu0
        %v1487 = vpop.f32.mrb[0].mxu0
        %v1488 = vadd.f32 0.0, %v1487
        %v1489 = vpop.f32.mrb[0].mxu0
        %1490 = vmatprep.mubr.bf16.mxu0 %v995
        %1491 = vmatmul.mubr.bf16.gmra.mrb[0].mxu0 %v994
        %v1492 = vpop.f32.mrb[0].mxu0
        %v1493 = vadd.f32 0.0, %v1492
        %v1494 = vpop.f32.mrb[0].mxu0
        %v1495 = vpop.f32.mrb[0].mxu0
        %v1496 = vadd.f32 0.0, %v1495
        %v1497 = vpop.f32.mrb[0].mxu0
        %1498 = vmatprep.mubr.bf16.mxu0 %v999
        %1499 = vmatmul.mubr.bf16.gmra.mrb[0].mxu0 %v998
        %v1500 = vpop.f32.mrb[0].mxu0
        %v1501 = vadd.f32 0.0, %v1500
        %v1502 = vpop.f32.mrb[0].mxu0
        %v1503 = vpop.f32.mrb[0].mxu0
        %v1504 = vadd.f32 0.0, %v1503
        %v1505 = vpop.f32.mrb[0].mxu0
        %1506 = vmatprep.mubr.bf16.mxu0 %v1003
        %1507 = vmatmul.mubr.bf16.gmra.mrb[0].mxu0 %v1002
        %v1508 = vpop.f32.mrb[0].mxu0
        %v1509 = vadd.f32 0.0, %v1508
        %v1510 = vpop.f32.mrb[0].mxu0
        %v1511 = vpop.f32.mrb[0].mxu0
        %v1512 = vadd.f32 0.0, %v1511
        %v1513 = vpop.f32.mrb[0].mxu0
        %1514 = vmatprep.mubr.bf16.mxu0 %v1007
        %1515 = vmatmul.mubr.bf16.gmra.mrb[0].mxu0 %v1006
        %v1516 = vpop.f32.mrb[0].mxu0
        %v1517 = vadd.f32 0.0, %v1516
        %v1518 = vpop.f32.mrb[0].mxu0
        %v1519 = vpop.f32.mrb[0].mxu0
        %v1520 = vadd.f32 0.0, %v1519
        %v1521 = vpop.f32.mrb[0].mxu0
        %1522 = vmatprep.mubr.bf16.mxu0 %v1011
        %1523 = vmatmul.mubr.bf16.gmra.mrb[0].mxu0 %v1010
        %v1524 = vpop.f32.mrb[0].mxu0
        %v1525 = vadd.f32 0.0, %v1524
        %v1526 = vpop.f32.mrb[0].mxu0
        %v1527 = vpop.f32.mrb[0].mxu0
        %v1528 = vadd.f32 0.0, %v1527
        %v1529 = vpop.f32.mrb[0].mxu0
        %1530 = vmatprep.mubr.bf16.mxu0 %v1015
        %1531 = vmatmul.mubr.bf16.gmra.mrb[0].mxu0 %v1014
        %v1532 = vpop.f32.mrb[0].mxu0
        %v1533 = vadd.f32 0.0, %v1532
        %v1534 = vpop.f32.mrb[0].mxu0
        %v1535 = vpop.f32.mrb[0].mxu0
        %v1536 = vadd.f32 0.0, %v1535
        %v1537 = vpop.f32.mrb[0].mxu0
        %1538 = vmatprep.mubr.bf16.mxu0 %v1019
        %1539 = vmatmul.mubr.bf16.gmra.mrb[0].mxu0 %v1018
        %v1540 = vpop.f32.mrb[0].mxu0
        %v1541 = vadd.f32 0.0, %v1540
        %v1542 = vpop.f32.mrb[0].mxu0
        %v1543 = vpop.f32.mrb[0].mxu0
        %v1544 = vadd.f32 0.0, %v1543
        %v1545 = vpop.f32.mrb[0].mxu0
        %1546 = vmatprep.mubr.bf16.mxu0 %v1023
        %1547 = vmatmul.mubr.bf16.gmra.mrb[0].mxu0 %v1022
        %v1548 = vpop.f32.mrb[0].mxu0
        %v1549 = vadd.f32 0.0, %v1548
        %v1550 = vpop.f32.mrb[0].mxu0
        %v1551 = vpop.f32.mrb[0].mxu0
        %v1552 = vadd.f32 0.0, %v1551
        %v1553 = vpop.f32.mrb[0].mxu0
        %1554 = vmatprep.mubr.bf16.mxu0 %v1027
        %1555 = vmatmul.mubr.bf16.gmra.mrb[0].mxu0 %v1026
        %v1556 = vpop.f32.mrb[0].mxu0
        %v1557 = vadd.f32 0.0, %v1556
        %v1558 = vpop.f32.mrb[0].mxu0
        %v1559 = vpop.f32.mrb[0].mxu0
        %v1560 = vadd.f32 0.0, %v1559
        %v1561 = vpop.f32.mrb[0].mxu0
        %1562 = vmatprep.mubr.bf16.mxu0 %v1031
        %1563 = vmatmul.mubr.bf16.gmra.mrb[0].mxu0 %v1030
        %v1564 = vpop.f32.mrb[0].mxu0
        %v1565 = vadd.f32 0.0, %v1564
        %v1566 = vpop.f32.mrb[0].mxu0
        %v1567 = vpop.f32.mrb[0].mxu0
        %v1568 = vadd.f32 0.0, %v1567
        %v1569 = vpop.f32.mrb[0].mxu0
        %1570 = vmatprep.mubr.bf16.mxu0 %v1035
        %1571 = vmatmul.mubr.bf16.gmra.mrb[0].mxu0 %v1034
        %v1572 = vpop.f32.mrb[0].mxu0
        %v1573 = vadd.f32 0.0, %v1572
        %v1574 = vpop.f32.mrb[0].mxu0
        %v1575 = vpop.f32.mrb[0].mxu0
        %v1576 = vadd.f32 0.0, %v1575
        %v1577 = vpop.f32.mrb[0].mxu0
        %1578 = vmatprep.mubr.bf16.mxu0 %v1039
        %1579 = vmatmul.mubr.bf16.gmra.mrb[0].mxu0 %v1038
        %v1580 = vpop.f32.mrb[0].mxu0
        %v1581 = vadd.f32 0.0, %v1580
        %v1582 = vpop.f32.mrb[0].mxu0
        %v1583 = vpop.f32.mrb[0].mxu0
        %v1584 = vadd.f32 0.0, %v1583
        %v1585 = vpop.f32.mrb[0].mxu0
        %1586 = vmatprep.mubr.bf16.mxu0 %v1043
        %1587 = vmatmul.mubr.bf16.gmra.mrb[0].mxu0 %v1042
        %v1588 = vpop.f32.mrb[0].mxu0
        %v1589 = vadd.f32 0.0, %v1588
        %v1590 = vpop.f32.mrb[0].mxu0
        %v1591 = vpop.f32.mrb[0].mxu0
        %v1592 = vadd.f32 0.0, %v1591
        %v1593 = vpop.f32.mrb[0].mxu0
        %1594 = vmatprep.mubr.bf16.mxu0 %v1047
        %1595 = vmatmul.mubr.bf16.gmra.mrb[0].mxu0 %v1046
        %v1596 = vpop.f32.mrb[0].mxu0
        %v1597 = vadd.f32 0.0, %v1596
        %v1598 = vpop.f32.mrb[0].mxu0
        %v1599 = vpop.f32.mrb[0].mxu0
        %v1600 = vadd.f32 0.0, %v1599
        %v1601 = vpop.f32.mrb[0].mxu0
        %1602 = vmatprep.mubr.bf16.mxu0 %v1051
        %1603 = vmatmul.mubr.bf16.gmra.mrb[0].mxu0 %v1050
        %v1604 = vpop.f32.mrb[0].mxu0
        %v1605 = vadd.f32 0.0, %v1604
        %v1606 = vpop.f32.mrb[0].mxu0
        %v1607 = vpop.f32.mrb[0].mxu0
        %v1608 = vadd.f32 0.0, %v1607
        %v1609 = vpop.f32.mrb[0].mxu0
        %1610 = vmatprep.mubr.bf16.mxu0 %v1055
        %1611 = vmatmul.mubr.bf16.gmra.mrb[0].mxu0 %v1054
        %v1612 = vpop.f32.mrb[0].mxu0
        %v1613 = vadd.f32 0.0, %v1612
        %v1614 = vpop.f32.mrb[0].mxu0
        %v1615 = vpop.f32.mrb[0].mxu0
        %v1616 = vadd.f32 0.0, %v1615
        %v1617 = vpop.f32.mrb[0].mxu0
        %1618 = vmatprep.mubr.bf16.mxu0 %v1059
        %1619 = vmatmul.mubr.bf16.gmra.mrb[0].mxu0 %v1058
        %v1620 = vpop.f32.mrb[0].mxu0
        %v1621 = vadd.f32 0.0, %v1620
        %v1622 = vpop.f32.mrb[0].mxu0
        %v1623 = vpop.f32.mrb[0].mxu0
        %v1624 = vadd.f32 0.0, %v1623
        %v1625 = vpop.f32.mrb[0].mxu0
        %1626 = vmatprep.mubr.bf16.mxu0 %v1063
        %1627 = vmatmul.mubr.bf16.gmra.mrb[0].mxu0 %v1062
        %v1628 = vpop.f32.mrb[0].mxu0
        %v1629 = vadd.f32 0.0, %v1628
        %v1630 = vpop.f32.mrb[0].mxu0
        %v1631 = vpop.f32.mrb[0].mxu0
        %v1632 = vadd.f32 0.0, %v1631
        %v1633 = vpop.f32.mrb[0].mxu0
        %1634 = vmatprep.mubr.bf16.mxu0 %v1067
        %1635 = vmatmul.mubr.bf16.gmra.mrb[0].mxu0 %v1066
        %v1636 = vpop.f32.mrb[0].mxu0
        %v1637 = vadd.f32 0.0, %v1636
        %v1638 = vpop.f32.mrb[0].mxu0
        %v1639 = vpop.f32.mrb[0].mxu0
        %v1640 = vadd.f32 0.0, %v1639
        %v1641 = vpop.f32.mrb[0].mxu0
        %1642 = vmatprep.mubr.bf16.mxu0 %v1071
        %1643 = vmatmul.mubr.bf16.gmra.mrb[0].mxu0 %v1070
        %v1644 = vpop.f32.mrb[0].mxu0
        %v1645 = vadd.f32 0.0, %v1644
        %v1646 = vpop.f32.mrb[0].mxu0
        %v1647 = vpop.f32.mrb[0].mxu0
        %v1648 = vadd.f32 0.0, %v1647
        %v1649 = vpop.f32.mrb[0].mxu0
        %1650 = vmatprep.mubr.bf16.mxu0 %v1075
        %1651 = vmatmul.mubr.bf16.gmra.mrb[0].mxu0 %v1074
        %v1652 = vpop.f32.mrb[0].mxu0
        %v1653 = vadd.f32 0.0, %v1652
        %v1654 = vpop.f32.mrb[0].mxu0
        %v1655 = vpop.f32.mrb[0].mxu0
        %v1656 = vadd.f32 0.0, %v1655
        %v1657 = vpop.f32.mrb[0].mxu0
        %1658 = vmatprep.mubr.bf16.mxu0 %v1079
        %1659 = vmatmul.mubr.bf16.gmra.mrb[0].mxu0 %v1078
        %v1660 = vpop.f32.mrb[0].mxu0
        %v1661 = vadd.f32 0.0, %v1660
        %v1662 = vpop.f32.mrb[0].mxu0
        %v1663 = vpop.f32.mrb[0].mxu0
        %v1664 = vadd.f32 0.0, %v1663
        %v1665 = vpop.f32.mrb[0].mxu0
        %1666 = vmatprep.mubr.bf16.mxu0 %v1083
        %1667 = vmatmul.mubr.bf16.gmra.mrb[0].mxu0 %v1082
        %v1668 = vpop.f32.mrb[0].mxu0
        %v1669 = vadd.f32 0.0, %v1668
        %v1670 = vpop.f32.mrb[0].mxu0
        %v1671 = vpop.f32.mrb[0].mxu0
        %v1672 = vadd.f32 0.0, %v1671
        %v1673 = vpop.f32.mrb[0].mxu0
        %1674 = vmatprep.mubr.bf16.mxu0 %v1087
        %1675 = vmatmul.mubr.bf16.gmra.mrb[0].mxu0 %v1086
        %v1676 = vpop.f32.mrb[0].mxu0
        %v1677 = vadd.f32 0.0, %v1676
        %v1678 = vpop.f32.mrb[0].mxu0
        %v1679 = vpop.f32.mrb[0].mxu0
        %v1680 = vadd.f32 0.0, %v1679
        %v1681 = vpop.f32.mrb[0].mxu0
        %1682 = vmatprep.mubr.bf16.mxu0 %v1091
        %1683 = vmatmul.mubr.bf16.gmra.mrb[0].mxu0 %v1090
        %v1684 = vpop.f32.mrb[0].mxu0
        %v1685 = vadd.f32 0.0, %v1684
        %v1686 = vpop.f32.mrb[0].mxu0
        %v1687 = vpop.f32.mrb[0].mxu0
        %v1688 = vadd.f32 0.0, %v1687
        %v1689 = vpop.f32.mrb[0].mxu0
        %1690 = vmatprep.mubr.bf16.mxu0 %v1095
        %1691 = vmatmul.mubr.bf16.gmra.mrb[0].mxu0 %v1094
        %v1692 = vpop.f32.mrb[0].mxu0
        %v1693 = vadd.f32 0.0, %v1692
        %v1694 = vpop.f32.mrb[0].mxu0
        %v1695 = vpop.f32.mrb[0].mxu0
        %v1696 = vadd.f32 0.0, %v1695
        %v1697 = vpop.f32.mrb[0].mxu0
        %1698 = vmatprep.mubr.bf16.mxu0 %v1099
        %1699 = vmatmul.mubr.bf16.gmra.mrb[0].mxu0 %v1098
        %v1700 = vpop.f32.mrb[0].mxu0
        %v1701 = vadd.f32 0.0, %v1700
        %v1702 = vpop.f32.mrb[0].mxu0
        %v1703 = vpop.f32.mrb[0].mxu0
        %v1704 = vadd.f32 0.0, %v1703
        %v1705 = vpop.f32.mrb[0].mxu0
        %1706 = vmatprep.mubr.bf16.mxu0 %v1103
        %1707 = vmatmul.mubr.bf16.gmra.mrb[0].mxu0 %v1102
        %v1708 = vpop.f32.mrb[0].mxu0
        %v1709 = vadd.f32 0.0, %v1708
        %v1710 = vpop.f32.mrb[0].mxu0
        %v1711 = vpop.f32.mrb[0].mxu0
        %v1712 = vadd.f32 0.0, %v1711
        %v1713 = vpop.f32.mrb[0].mxu0
        %1714 = vdwg.mxu0
        %1715 = vmatprep.subr.bf16.mxu0 0
        %1716 = vmatpush1.bf16.msra.mxu0 %v1378
        %1717 = vmatprep.subr.bf16.mxu0 0
        %1718 = vmatpush1.bf16.msra.mxu0 %v1379
        %1719 = vmatprep.subr.bf16.mxu0 0
        %1720 = vmatpush1.bf16.msra.mxu0 %v1380
        %1721 = vmatprep.subr.bf16.mxu0 0
        %1722 = vmatpush1.bf16.msra.mxu0 %v1381
        %1723 = vmatprep.subr.bf16.mxu0 0
        %1724 = vmatpush1.bf16.msra.mxu0 %v1382
        %1725 = vmatprep.subr.bf16.mxu0 0
        %1726 = vmatpush1.bf16.msra.mxu0 %v1383
        %1727 = vmatprep.subr.bf16.mxu0 0
        %1728 = vmatpush1.bf16.msra.mxu0 %v1384
        %1729 = vmatprep.subr.bf16.mxu0 0
        %1730 = vmatpush1.bf16.msra.mxu0 %v1385
        %1731 = vmatprep.subr.bf16.mxu0 0
        %1732 = vmatpush1.bf16.msra.mxu0 %v1386
        %1733 = vmatprep.subr.bf16.mxu0 0
        %1734 = vmatpush1.bf16.msra.mxu0 %v1387
        %1735 = vmatprep.subr.bf16.mxu0 0
        %1736 = vmatpush1.bf16.msra.mxu0 %v1388
        %1737 = vmatprep.subr.bf16.mxu0 0
        %1738 = vmatpush1.bf16.msra.mxu0 %v1389
        %1739 = vmatprep.subr.bf16.mxu0 0
        %1740 = vmatpush1.bf16.msra.mxu0 %v1390
        %1741 = vmatprep.subr.bf16.mxu0 0
        %1742 = vmatpush1.bf16.msra.mxu0 %v1391
        %1743 = vmatprep.subr.bf16.mxu0 0
        %1744 = vmatpush1.bf16.msra.mxu0 %v1392
        %1745 = vmatprep.subr.bf16.mxu0 0
        %1746 = vmatpush1.bf16.msra.mxu0 %v1393
        %1747 = vmatprep.mubr.bf16.mxu0 %v981
        %1748 = vmatmul.mubr.bf16.gmra.mrb[0].mxu0 %v980
        %v1749 = vpop.f32.mrb[0].mxu0
        %v1750 = vadd.f32 %v1461, %v1749
        %v1751 = vpop.f32.mrb[0].mxu0
        %v1752 = vpop.f32.mrb[0].mxu0
        %v1753 = vadd.f32 %v1464, %v1752
        %v1754 = vpop.f32.mrb[0].mxu0
        %1755 = vmatprep.mubr.bf16.mxu0 %v985
        %1756 = vmatmul.mubr.bf16.gmra.mrb[0].mxu0 %v984
        %v1757 = vpop.f32.mrb[0].mxu0
        %v1758 = vadd.f32 %v1469, %v1757
        %v1759 = vpop.f32.mrb[0].mxu0
        %v1760 = vpop.f32.mrb[0].mxu0
        %v1761 = vadd.f32 %v1472, %v1760
        %v1762 = vpop.f32.mrb[0].mxu0
        %1763 = vmatprep.mubr.bf16.mxu0 %v989
        %1764 = vmatmul.mubr.bf16.gmra.mrb[0].mxu0 %v988
        %v1765 = vpop.f32.mrb[0].mxu0
        %v1766 = vadd.f32 %v1477, %v1765
        %v1767 = vpop.f32.mrb[0].mxu0
        %v1768 = vpop.f32.mrb[0].mxu0
        %v1769 = vadd.f32 %v1480, %v1768
        %v1770 = vpop.f32.mrb[0].mxu0
        %1771 = vmatprep.mubr.bf16.mxu0 %v993
        %1772 = vmatmul.mubr.bf16.gmra.mrb[0].mxu0 %v992
        %v1773 = vpop.f32.mrb[0].mxu0
        %v1774 = vadd.f32 %v1485, %v1773
        %v1775 = vpop.f32.mrb[0].mxu0
        %v1776 = vpop.f32.mrb[0].mxu0
        %v1777 = vadd.f32 %v1488, %v1776
        %v1778 = vpop.f32.mrb[0].mxu0
        %1779 = vmatprep.mubr.bf16.mxu0 %v997
        %1780 = vmatmul.mubr.bf16.gmra.mrb[0].mxu0 %v996
        %v1781 = vpop.f32.mrb[0].mxu0
        %v1782 = vadd.f32 %v1493, %v1781
        %v1783 = vpop.f32.mrb[0].mxu0
        %v1784 = vpop.f32.mrb[0].mxu0
        %v1785 = vadd.f32 %v1496, %v1784
        %v1786 = vpop.f32.mrb[0].mxu0
        %1787 = vmatprep.mubr.bf16.mxu0 %v1001
        %1788 = vmatmul.mubr.bf16.gmra.mrb[0].mxu0 %v1000
        %v1789 = vpop.f32.mrb[0].mxu0
        %v1790 = vadd.f32 %v1501, %v1789
        %v1791 = vpop.f32.mrb[0].mxu0
        %v1792 = vpop.f32.mrb[0].mxu0
        %v1793 = vadd.f32 %v1504, %v1792
        %v1794 = vpop.f32.mrb[0].mxu0
        %1795 = vmatprep.mubr.bf16.mxu0 %v1005
        %1796 = vmatmul.mubr.bf16.gmra.mrb[0].mxu0 %v1004
        %v1797 = vpop.f32.mrb[0].mxu0
        %v1798 = vadd.f32 %v1509, %v1797
        %v1799 = vpop.f32.mrb[0].mxu0
        %v1800 = vpop.f32.mrb[0].mxu0
        %v1801 = vadd.f32 %v1512, %v1800
        %v1802 = vpop.f32.mrb[0].mxu0
        %1803 = vmatprep.mubr.bf16.mxu0 %v1009
        %1804 = vmatmul.mubr.bf16.gmra.mrb[0].mxu0 %v1008
        %v1805 = vpop.f32.mrb[0].mxu0
        %v1806 = vadd.f32 %v1517, %v1805
        %v1807 = vpop.f32.mrb[0].mxu0
        %v1808 = vpop.f32.mrb[0].mxu0
        %v1809 = vadd.f32 %v1520, %v1808
        %v1810 = vpop.f32.mrb[0].mxu0
        %1811 = vmatprep.mubr.bf16.mxu0 %v1013
        %1812 = vmatmul.mubr.bf16.gmra.mrb[0].mxu0 %v1012
        %v1813 = vpop.f32.mrb[0].mxu0
        %v1814 = vadd.f32 %v1525, %v1813
        %v1815 = vpop.f32.mrb[0].mxu0
        %v1816 = vpop.f32.mrb[0].mxu0
        %v1817 = vadd.f32 %v1528, %v1816
        %v1818 = vpop.f32.mrb[0].mxu0
        %1819 = vmatprep.mubr.bf16.mxu0 %v1017
        %1820 = vmatmul.mubr.bf16.gmra.mrb[0].mxu0 %v1016
        %v1821 = vpop.f32.mrb[0].mxu0
        %v1822 = vadd.f32 %v1533, %v1821
        %v1823 = vpop.f32.mrb[0].mxu0
        %v1824 = vpop.f32.mrb[0].mxu0
        %v1825 = vadd.f32 %v1536, %v1824
        %v1826 = vpop.f32.mrb[0].mxu0
        %1827 = vmatprep.mubr.bf16.mxu0 %v1021
        %1828 = vmatmul.mubr.bf16.gmra.mrb[0].mxu0 %v1020
        %v1829 = vpop.f32.mrb[0].mxu0
        %v1830 = vadd.f32 %v1541, %v1829
        %v1831 = vpop.f32.mrb[0].mxu0
        %v1832 = vpop.f32.mrb[0].mxu0
        %v1833 = vadd.f32 %v1544, %v1832
        %v1834 = vpop.f32.mrb[0].mxu0
        %1835 = vmatprep.mubr.bf16.mxu0 %v1025
        %1836 = vmatmul.mubr.bf16.gmra.mrb[0].mxu0 %v1024
        %v1837 = vpop.f32.mrb[0].mxu0
        %v1838 = vadd.f32 %v1549, %v1837
        %v1839 = vpop.f32.mrb[0].mxu0
        %v1840 = vpop.f32.mrb[0].mxu0
        %v1841 = vadd.f32 %v1552, %v1840
        %v1842 = vpop.f32.mrb[0].mxu0
        %1843 = vmatprep.mubr.bf16.mxu0 %v1029
        %1844 = vmatmul.mubr.bf16.gmra.mrb[0].mxu0 %v1028
        %v1845 = vpop.f32.mrb[0].mxu0
        %v1846 = vadd.f32 %v1557, %v1845
        %v1847 = vpop.f32.mrb[0].mxu0
        %v1848 = vpop.f32.mrb[0].mxu0
        %v1849 = vadd.f32 %v1560, %v1848
        %v1850 = vpop.f32.mrb[0].mxu0
        %1851 = vmatprep.mubr.bf16.mxu0 %v1033
        %1852 = vmatmul.mubr.bf16.gmra.mrb[0].mxu0 %v1032
        %v1853 = vpop.f32.mrb[0].mxu0
        %v1854 = vadd.f32 %v1565, %v1853
        %v1855 = vpop.f32.mrb[0].mxu0
        %v1856 = vpop.f32.mrb[0].mxu0
        %v1857 = vadd.f32 %v1568, %v1856
        %v1858 = vpop.f32.mrb[0].mxu0
        %1859 = vmatprep.mubr.bf16.mxu0 %v1037
        %1860 = vmatmul.mubr.bf16.gmra.mrb[0].mxu0 %v1036
        %v1861 = vpop.f32.mrb[0].mxu0
        %v1862 = vadd.f32 %v1573, %v1861
        %v1863 = vpop.f32.mrb[0].mxu0
        %v1864 = vpop.f32.mrb[0].mxu0
        %v1865 = vadd.f32 %v1576, %v1864
        %v1866 = vpop.f32.mrb[0].mxu0
        %1867 = vmatprep.mubr.bf16.mxu0 %v1041
        %1868 = vmatmul.mubr.bf16.gmra.mrb[0].mxu0 %v1040
        %v1869 = vpop.f32.mrb[0].mxu0
        %v1870 = vadd.f32 %v1581, %v1869
        %v1871 = vpop.f32.mrb[0].mxu0
        %v1872 = vpop.f32.mrb[0].mxu0
        %v1873 = vadd.f32 %v1584, %v1872
        %v1874 = vpop.f32.mrb[0].mxu0
        %1875 = vmatprep.mubr.bf16.mxu0 %v1045
        %1876 = vmatmul.mubr.bf16.gmra.mrb[0].mxu0 %v1044
        %v1877 = vpop.f32.mrb[0].mxu0
        %v1878 = vadd.f32 %v1589, %v1877
        %v1879 = vpop.f32.mrb[0].mxu0
        %v1880 = vpop.f32.mrb[0].mxu0
        %v1881 = vadd.f32 %v1592, %v1880
        %v1882 = vpop.f32.mrb[0].mxu0
        %1883 = vmatprep.mubr.bf16.mxu0 %v1049
        %1884 = vmatmul.mubr.bf16.gmra.mrb[0].mxu0 %v1048
        %v1885 = vpop.f32.mrb[0].mxu0
        %v1886 = vadd.f32 %v1597, %v1885
        %v1887 = vpop.f32.mrb[0].mxu0
        %v1888 = vpop.f32.mrb[0].mxu0
        %v1889 = vadd.f32 %v1600, %v1888
        %v1890 = vpop.f32.mrb[0].mxu0
        %1891 = vmatprep.mubr.bf16.mxu0 %v1053
        %1892 = vmatmul.mubr.bf16.gmra.mrb[0].mxu0 %v1052
        %v1893 = vpop.f32.mrb[0].mxu0
        %v1894 = vadd.f32 %v1605, %v1893
        %v1895 = vpop.f32.mrb[0].mxu0
        %v1896 = vpop.f32.mrb[0].mxu0
        %v1897 = vadd.f32 %v1608, %v1896
        %v1898 = vpop.f32.mrb[0].mxu0
        %1899 = vmatprep.mubr.bf16.mxu0 %v1057
        %1900 = vmatmul.mubr.bf16.gmra.mrb[0].mxu0 %v1056
        %v1901 = vpop.f32.mrb[0].mxu0
        %v1902 = vadd.f32 %v1613, %v1901
        %v1903 = vpop.f32.mrb[0].mxu0
        %v1904 = vpop.f32.mrb[0].mxu0
        %v1905 = vadd.f32 %v1616, %v1904
        %v1906 = vpop.f32.mrb[0].mxu0
        %1907 = vmatprep.mubr.bf16.mxu0 %v1061
        %1908 = vmatmul.mubr.bf16.gmra.mrb[0].mxu0 %v1060
        %v1909 = vpop.f32.mrb[0].mxu0
        %v1910 = vadd.f32 %v1621, %v1909
        %v1911 = vpop.f32.mrb[0].mxu0
        %v1912 = vpop.f32.mrb[0].mxu0
        %v1913 = vadd.f32 %v1624, %v1912
        %v1914 = vpop.f32.mrb[0].mxu0
        %1915 = vmatprep.mubr.bf16.mxu0 %v1065
        %1916 = vmatmul.mubr.bf16.gmra.mrb[0].mxu0 %v1064
        %v1917 = vpop.f32.mrb[0].mxu0
        %v1918 = vadd.f32 %v1629, %v1917
        %v1919 = vpop.f32.mrb[0].mxu0
        %v1920 = vpop.f32.mrb[0].mxu0
        %v1921 = vadd.f32 %v1632, %v1920
        %v1922 = vpop.f32.mrb[0].mxu0
        %1923 = vmatprep.mubr.bf16.mxu0 %v1069
        %1924 = vmatmul.mubr.bf16.gmra.mrb[0].mxu0 %v1068
        %v1925 = vpop.f32.mrb[0].mxu0
        %v1926 = vadd.f32 %v1637, %v1925
        %v1927 = vpop.f32.mrb[0].mxu0
        %v1928 = vpop.f32.mrb[0].mxu0
        %v1929 = vadd.f32 %v1640, %v1928
        %v1930 = vpop.f32.mrb[0].mxu0
        %1931 = vmatprep.mubr.bf16.mxu0 %v1073
        %1932 = vmatmul.mubr.bf16.gmra.mrb[0].mxu0 %v1072
        %v1933 = vpop.f32.mrb[0].mxu0
        %v1934 = vadd.f32 %v1645, %v1933
        %v1935 = vpop.f32.mrb[0].mxu0
        %v1936 = vpop.f32.mrb[0].mxu0
        %v1937 = vadd.f32 %v1648, %v1936
        %v1938 = vpop.f32.mrb[0].mxu0
        %1939 = vmatprep.mubr.bf16.mxu0 %v1077
        %1940 = vmatmul.mubr.bf16.gmra.mrb[0].mxu0 %v1076
        %v1941 = vpop.f32.mrb[0].mxu0
        %v1942 = vadd.f32 %v1653, %v1941
        %v1943 = vpop.f32.mrb[0].mxu0
        %v1944 = vpop.f32.mrb[0].mxu0
        %v1945 = vadd.f32 %v1656, %v1944
        %v1946 = vpop.f32.mrb[0].mxu0
        %1947 = vmatprep.mubr.bf16.mxu0 %v1081
        %1948 = vmatmul.mubr.bf16.gmra.mrb[0].mxu0 %v1080
        %v1949 = vpop.f32.mrb[0].mxu0
        %v1950 = vadd.f32 %v1661, %v1949
        %v1951 = vpop.f32.mrb[0].mxu0
        %v1952 = vpop.f32.mrb[0].mxu0
        %v1953 = vadd.f32 %v1664, %v1952
        %v1954 = vpop.f32.mrb[0].mxu0
        %1955 = vmatprep.mubr.bf16.mxu0 %v1085
        %1956 = vmatmul.mubr.bf16.gmra.mrb[0].mxu0 %v1084
        %v1957 = vpop.f32.mrb[0].mxu0
        %v1958 = vadd.f32 %v1669, %v1957
        %v1959 = vpop.f32.mrb[0].mxu0
        %v1960 = vpop.f32.mrb[0].mxu0
        %v1961 = vadd.f32 %v1672, %v1960
        %v1962 = vpop.f32.mrb[0].mxu0
        %1963 = vmatprep.mubr.bf16.mxu0 %v1089
        %1964 = vmatmul.mubr.bf16.gmra.mrb[0].mxu0 %v1088
        %v1965 = vpop.f32.mrb[0].mxu0
        %v1966 = vadd.f32 %v1677, %v1965
        %v1967 = vpop.f32.mrb[0].mxu0
        %v1968 = vpop.f32.mrb[0].mxu0
        %v1969 = vadd.f32 %v1680, %v1968
        %v1970 = vpop.f32.mrb[0].mxu0
        %1971 = vmatprep.mubr.bf16.mxu0 %v1093
        %1972 = vmatmul.mubr.bf16.gmra.mrb[0].mxu0 %v1092
        %v1973 = vpop.f32.mrb[0].mxu0
        %v1974 = vadd.f32 %v1685, %v1973
        %v1975 = vpop.f32.mrb[0].mxu0
        %v1976 = vpop.f32.mrb[0].mxu0
        %v1977 = vadd.f32 %v1688, %v1976
        %v1978 = vpop.f32.mrb[0].mxu0
        %1979 = vmatprep.mubr.bf16.mxu0 %v1097
        %1980 = vmatmul.mubr.bf16.gmra.mrb[0].mxu0 %v1096
        %v1981 = vpop.f32.mrb[0].mxu0
        %v1982 = vadd.f32 %v1693, %v1981
        %v1983 = vpop.f32.mrb[0].mxu0
        %v1984 = vpop.f32.mrb[0].mxu0
        %v1985 = vadd.f32 %v1696, %v1984
        %v1986 = vpop.f32.mrb[0].mxu0
        %1987 = vmatprep.mubr.bf16.mxu0 %v1101
        %1988 = vmatmul.mubr.bf16.gmra.mrb[0].mxu0 %v1100
        %v1989 = vpop.f32.mrb[0].mxu0
        %v1990 = vadd.f32 %v1701, %v1989
        %v1991 = vpop.f32.mrb[0].mxu0
        %v1992 = vpop.f32.mrb[0].mxu0
        %v1993 = vadd.f32 %v1704, %v1992
        %v1994 = vpop.f32.mrb[0].mxu0
        %1995 = vmatprep.mubr.bf16.mxu0 %v1105
        %1996 = vmatmul.mubr.bf16.gmra.mrb[0].mxu0 %v1104
        %v1997 = vpop.f32.mrb[0].mxu0
        %v1998 = vadd.f32 %v1709, %v1997
        %v1999 = vpop.f32.mrb[0].mxu0
        %v2000 = vpop.f32.mrb[0].mxu0
        %v2001 = vadd.f32 %v1712, %v2000
        %v2002 = vpop.f32.mrb[0].mxu0
        %2003 = vdwg.mxu0
        %v2004 = vadd.f32 %v402, %v1750
        %v2005 = vadd.f32 %v403, %v1753
        %v2006 = vadd.f32 %v404, %v1758
        %v2007 = vadd.f32 %v405, %v1761
        %v2008 = vadd.f32 %v406, %v1766
        %v2009 = vadd.f32 %v407, %v1769
        %v2010 = vadd.f32 %v408, %v1774
        %v2011 = vadd.f32 %v409, %v1777
        %v2012 = vadd.f32 %v410, %v1782
        %v2013 = vadd.f32 %v411, %v1785
        %v2014 = vadd.f32 %v412, %v1790
        %v2015 = vadd.f32 %v413, %v1793
        %v2016 = vadd.f32 %v414, %v1798
        %v2017 = vadd.f32 %v415, %v1801
        %v2018 = vadd.f32 %v416, %v1806
        %v2019 = vadd.f32 %v417, %v1809
        %v2020 = vadd.f32 %v418, %v1814
        %v2021 = vadd.f32 %v419, %v1817
        %v2022 = vadd.f32 %v420, %v1822
        %v2023 = vadd.f32 %v421, %v1825
        %v2024 = vadd.f32 %v422, %v1830
        %v2025 = vadd.f32 %v423, %v1833
        %v2026 = vadd.f32 %v424, %v1838
        %v2027 = vadd.f32 %v425, %v1841
        %v2028 = vadd.f32 %v426, %v1846
        %v2029 = vadd.f32 %v427, %v1849
        %v2030 = vadd.f32 %v428, %v1854
        %v2031 = vadd.f32 %v429, %v1857
        %v2032 = vadd.f32 %v430, %v1862
        %v2033 = vadd.f32 %v431, %v1865
        %v2034 = vadd.f32 %v432, %v1870
        %v2035 = vadd.f32 %v433, %v1873
        %v2036 = vadd.f32 %v434, %v1878
        %v2037 = vadd.f32 %v435, %v1881
        %v2038 = vadd.f32 %v436, %v1886
        %v2039 = vadd.f32 %v437, %v1889
        %v2040 = vadd.f32 %v438, %v1894
        %v2041 = vadd.f32 %v439, %v1897
        %v2042 = vadd.f32 %v440, %v1902
        %v2043 = vadd.f32 %v441, %v1905
        %v2044 = vadd.f32 %v442, %v1910
        %v2045 = vadd.f32 %v443, %v1913
        %v2046 = vadd.f32 %v444, %v1918
        %v2047 = vadd.f32 %v445, %v1921
        %v2048 = vadd.f32 %v446, %v1926
        %v2049 = vadd.f32 %v447, %v1929
        %v2050 = vadd.f32 %v448, %v1934
        %v2051 = vadd.f32 %v449, %v1937
        %v2052 = vadd.f32 %v450, %v1942
        %v2053 = vadd.f32 %v451, %v1945
        %v2054 = vadd.f32 %v452, %v1950
        %v2055 = vadd.f32 %v453, %v1953
        %v2056 = vadd.f32 %v454, %v1958
        %v2057 = vadd.f32 %v455, %v1961
        %v2058 = vadd.f32 %v456, %v1966
        %v2059 = vadd.f32 %v457, %v1969
        %v2060 = vadd.f32 %v458, %v1974
        %v2061 = vadd.f32 %v459, %v1977
        %v2062 = vadd.f32 %v460, %v1982
        %v2063 = vadd.f32 %v461, %v1985
        %v2064 = vadd.f32 %v462, %v1990
        %v2065 = vadd.f32 %v463, %v1993
        %v2066 = vadd.f32 %v464, %v1998
        %v2067 = vadd.f32 %v465, %v2001
        %vm2068 = vcmask 130048
        %2069 = vst.msk [vmem:[#allocation2] sm:$0xff] %vm2068, %v2004
        %2070 = vst.msk [vmem:[#allocation2 + $0x8] sm:$0xff] %vm2068, %v2005
        %2071 = vst.msk [vmem:[#allocation2 + $0x10] sm:$0xff] %vm2068, %v2006
        %2072 = vst.msk [vmem:[#allocation2 + $0x18] sm:$0xff] %vm2068, %v2007
        %2073 = vst.msk [vmem:[#allocation2 + $0x20] sm:$0xff] %vm2068, %v2008
        %2074 = vst.msk [vmem:[#allocation2 + $0x28] sm:$0xff] %vm2068, %v2009
        %2075 = vst.msk [vmem:[#allocation2 + $0x30] sm:$0xff] %vm2068, %v2010
        %2076 = vst.msk [vmem:[#allocation2 + $0x38] sm:$0xff] %vm2068, %v2011
        %2077 = vst.msk [vmem:[#allocation2 + $0x40] sm:$0xff] %vm2068, %v2012
        %2078 = vst.msk [vmem:[#allocation2 + $0x48] sm:$0xff] %vm2068, %v2013
        %2079 = vst.msk [vmem:[#allocation2 + $0x50] sm:$0xff] %vm2068, %v2014
        %2080 = vst.msk [vmem:[#allocation2 + $0x58] sm:$0xff] %vm2068, %v2015
        %2081 = vst.msk [vmem:[#allocation2 + $0x60] sm:$0xff] %vm2068, %v2016
        %2082 = vst.msk [vmem:[#allocation2 + $0x68] sm:$0xff] %vm2068, %v2017
        %2083 = vst.msk [vmem:[#allocation2 + $0x70] sm:$0xff] %vm2068, %v2018
        %2084 = vst.msk [vmem:[#allocation2 + $0x78] sm:$0xff] %vm2068, %v2019
        %2085 = vst.msk [vmem:[#allocation2 + $0x80] sm:$0xff] %vm2068, %v2020
        %2086 = vst.msk [vmem:[#allocation2 + $0x88] sm:$0xff] %vm2068, %v2021
        %2087 = vst.msk [vmem:[#allocation2 + $0x90] sm:$0xff] %vm2068, %v2022
        %2088 = vst.msk [vmem:[#allocation2 + $0x98] sm:$0xff] %vm2068, %v2023
        %2089 = vst.msk [vmem:[#allocation2 + $0xa0] sm:$0xff] %vm2068, %v2024
        %2090 = vst.msk [vmem:[#allocation2 + $0xa8] sm:$0xff] %vm2068, %v2025
        %2091 = vst.msk [vmem:[#allocation2 + $0xb0] sm:$0xff] %vm2068, %v2026
        %2092 = vst.msk [vmem:[#allocation2 + $0xb8] sm:$0xff] %vm2068, %v2027
        %2093 = vst.msk [vmem:[#allocation2 + $0xc0] sm:$0xff] %vm2068, %v2028
        %2094 = vst.msk [vmem:[#allocation2 + $0xc8] sm:$0xff] %vm2068, %v2029
        %2095 = vst.msk [vmem:[#allocation2 + $0xd0] sm:$0xff] %vm2068, %v2030
        %2096 = vst.msk [vmem:[#allocation2 + $0xd8] sm:$0xff] %vm2068, %v2031
        %2097 = vst.msk [vmem:[#allocation2 + $0xe0] sm:$0xff] %vm2068, %v2032
        %2098 = vst.msk [vmem:[#allocation2 + $0xe8] sm:$0xff] %vm2068, %v2033
        %2099 = vst.msk [vmem:[#allocation2 + $0xf0] sm:$0xff] %vm2068, %v2034
        %2100 = vst.msk [vmem:[#allocation2 + $0xf8] sm:$0xff] %vm2068, %v2035
        %2101 = vst.msk [vmem:[#allocation2 + $0x100] sm:$0xff] %vm2068, %v2036
        %2102 = vst.msk [vmem:[#allocation2 + $0x108] sm:$0xff] %vm2068, %v2037
        %2103 = vst.msk [vmem:[#allocation2 + $0x110] sm:$0xff] %vm2068, %v2038
        %2104 = vst.msk [vmem:[#allocation2 + $0x118] sm:$0xff] %vm2068, %v2039
        %2105 = vst.msk [vmem:[#allocation2 + $0x120] sm:$0xff] %vm2068, %v2040
        %2106 = vst.msk [vmem:[#allocation2 + $0x128] sm:$0xff] %vm2068, %v2041
        %2107 = vst.msk [vmem:[#allocation2 + $0x130] sm:$0xff] %vm2068, %v2042
        %2108 = vst.msk [vmem:[#allocation2 + $0x138] sm:$0xff] %vm2068, %v2043
        %2109 = vst.msk [vmem:[#allocation2 + $0x140] sm:$0xff] %vm2068, %v2044
        %2110 = vst.msk [vmem:[#allocation2 + $0x148] sm:$0xff] %vm2068, %v2045
        %2111 = vst.msk [vmem:[#allocation2 + $0x150] sm:$0xff] %vm2068, %v2046
        %2112 = vst.msk [vmem:[#allocation2 + $0x158] sm:$0xff] %vm2068, %v2047
        %2113 = vst.msk [vmem:[#allocation2 + $0x160] sm:$0xff] %vm2068, %v2048
        %2114 = vst.msk [vmem:[#allocation2 + $0x168] sm:$0xff] %vm2068, %v2049
        %2115 = vst.msk [vmem:[#allocation2 + $0x170] sm:$0xff] %vm2068, %v2050
        %2116 = vst.msk [vmem:[#allocation2 + $0x178] sm:$0xff] %vm2068, %v2051
        %2117 = vst.msk [vmem:[#allocation2 + $0x180] sm:$0xff] %vm2068, %v2052
        %2118 = vst.msk [vmem:[#allocation2 + $0x188] sm:$0xff] %vm2068, %v2053
        %2119 = vst.msk [vmem:[#allocation2 + $0x190] sm:$0xff] %vm2068, %v2054
        %2120 = vst.msk [vmem:[#allocation2 + $0x198] sm:$0xff] %vm2068, %v2055
        %2121 = vst.msk [vmem:[#allocation2 + $0x1a0] sm:$0xff] %vm2068, %v2056
        %2122 = vst.msk [vmem:[#allocation2 + $0x1a8] sm:$0xff] %vm2068, %v2057
        %2123 = vst.msk [vmem:[#allocation2 + $0x1b0] sm:$0xff] %vm2068, %v2058
        %2124 = vst.msk [vmem:[#allocation2 + $0x1b8] sm:$0xff] %vm2068, %v2059
        %2125 = vst.msk [vmem:[#allocation2 + $0x1c0] sm:$0xff] %vm2068, %v2060
        %2126 = vst.msk [vmem:[#allocation2 + $0x1c8] sm:$0xff] %vm2068, %v2061
        %2127 = vst.msk [vmem:[#allocation2 + $0x1d0] sm:$0xff] %vm2068, %v2062
        %2128 = vst.msk [vmem:[#allocation2 + $0x1d8] sm:$0xff] %vm2068, %v2063
        %2129 = vst.msk [vmem:[#allocation2 + $0x1e0] sm:$0xff] %vm2068, %v2064
        %2130 = vst.msk [vmem:[#allocation2 + $0x1e8] sm:$0xff] %vm2068, %v2065
        %2131 = vst.msk [vmem:[#allocation2 + $0x1f0] sm:$0xff] %vm2068, %v2066
        %2132 = vst.msk [vmem:[#allocation2 + $0x1f8] sm:$0xff] %vm2068, %v2067
        %p2133 = scmp.eq.s32.totalorder %s27, 1
        // Predicated region
        $region53: #{tpu_custom_call.1} parent=35 // pred_check
          %p2134 = pneg %p2133
        $region54: #{tpu_custom_call.1} parent=35 // pred_check_branch
          %2136 = sbr.rel (%p2134) target = $region56
        $region55: #{tpu_custom_call.1} parent=35 // pred_region
          %v2137 = vld [vmem:[#allocation2] sm:$0xff]
          %v2138 = vld [vmem:[#allocation2 + $0x8] sm:$0xff]
          %v2139 = vld [vmem:[#allocation2 + $0x10] sm:$0xff]
          %v2140 = vld [vmem:[#allocation2 + $0x18] sm:$0xff]
          %v2141 = vld [vmem:[#allocation2 + $0x20] sm:$0xff]
          %v2142 = vld [vmem:[#allocation2 + $0x28] sm:$0xff]
          %v2143 = vld [vmem:[#allocation2 + $0x30] sm:$0xff]
          %v2144 = vld [vmem:[#allocation2 + $0x38] sm:$0xff]
          %v2145 = vld [vmem:[#allocation2 + $0x40] sm:$0xff]
          %v2146 = vld [vmem:[#allocation2 + $0x48] sm:$0xff]
          %v2147 = vld [vmem:[#allocation2 + $0x50] sm:$0xff]
          %v2148 = vld [vmem:[#allocation2 + $0x58] sm:$0xff]
          %v2149 = vld [vmem:[#allocation2 + $0x60] sm:$0xff]
          %v2150 = vld [vmem:[#allocation2 + $0x68] sm:$0xff]
          %v2151 = vld [vmem:[#allocation2 + $0x70] sm:$0xff]
          %v2152 = vld [vmem:[#allocation2 + $0x78] sm:$0xff]
          %v2153 = vld [vmem:[#allocation2 + $0x80] sm:$0xff]
          %v2154 = vld [vmem:[#allocation2 + $0x88] sm:$0xff]
          %v2155 = vld [vmem:[#allocation2 + $0x90] sm:$0xff]
          %v2156 = vld [vmem:[#allocation2 + $0x98] sm:$0xff]
          %v2157 = vld [vmem:[#allocation2 + $0xa0] sm:$0xff]
          %v2158 = vld [vmem:[#allocation2 + $0xa8] sm:$0xff]
          %v2159 = vld [vmem:[#allocation2 + $0xb0] sm:$0xff]
          %v2160 = vld [vmem:[#allocation2 + $0xb8] sm:$0xff]
          %v2161 = vld [vmem:[#allocation2 + $0xc0] sm:$0xff]
          %v2162 = vld [vmem:[#allocation2 + $0xc8] sm:$0xff]
          %v2163 = vld [vmem:[#allocation2 + $0xd0] sm:$0xff]
          %v2164 = vld [vmem:[#allocation2 + $0xd8] sm:$0xff]
          %v2165 = vld [vmem:[#allocation2 + $0xe0] sm:$0xff]
          %v2166 = vld [vmem:[#allocation2 + $0xe8] sm:$0xff]
          %v2167 = vld [vmem:[#allocation2 + $0xf0] sm:$0xff]
          %v2168 = vld [vmem:[#allocation2 + $0xf8] sm:$0xff]
          %v2169 = vld [vmem:[#allocation2 + $0x100] sm:$0xff]
          %v2170 = vld [vmem:[#allocation2 + $0x108] sm:$0xff]
          %v2171 = vld [vmem:[#allocation2 + $0x110] sm:$0xff]
          %v2172 = vld [vmem:[#allocation2 + $0x118] sm:$0xff]
          %v2173 = vld [vmem:[#allocation2 + $0x120] sm:$0xff]
          %v2174 = vld [vmem:[#allocation2 + $0x128] sm:$0xff]
          %v2175 = vld [vmem:[#allocation2 + $0x130] sm:$0xff]
          %v2176 = vld [vmem:[#allocation2 + $0x138] sm:$0xff]
          %v2177 = vld [vmem:[#allocation2 + $0x140] sm:$0xff]
          %v2178 = vld [vmem:[#allocation2 + $0x148] sm:$0xff]
          %v2179 = vld [vmem:[#allocation2 + $0x150] sm:$0xff]
          %v2180 = vld [vmem:[#allocation2 + $0x158] sm:$0xff]
          %v2181 = vld [vmem:[#allocation2 + $0x160] sm:$0xff]
          %v2182 = vld [vmem:[#allocation2 + $0x168] sm:$0xff]
          %v2183 = vld [vmem:[#allocation2 + $0x170] sm:$0xff]
          %v2184 = vld [vmem:[#allocation2 + $0x178] sm:$0xff]
          %v2185 = vld [vmem:[#allocation2 + $0x180] sm:$0xff]
          %v2186 = vld [vmem:[#allocation2 + $0x188] sm:$0xff]
          %v2187 = vld [vmem:[#allocation2 + $0x190] sm:$0xff]
          %v2188 = vld [vmem:[#allocation2 + $0x198] sm:$0xff]
          %v2189 = vld [vmem:[#allocation2 + $0x1a0] sm:$0xff]
          %v2190 = vld [vmem:[#allocation2 + $0x1a8] sm:$0xff]
          %v2191 = vld [vmem:[#allocation2 + $0x1b0] sm:$0xff]
          %v2192 = vld [vmem:[#allocation2 + $0x1b8] sm:$0xff]
          %v2193 = vld [vmem:[#allocation2 + $0x1c0] sm:$0xff]
          %v2194 = vld [vmem:[#allocation2 + $0x1c8] sm:$0xff]
          %v2195 = vld [vmem:[#allocation2 + $0x1d0] sm:$0xff]
          %v2196 = vld [vmem:[#allocation2 + $0x1d8] sm:$0xff]
          %v2197 = vld [vmem:[#allocation2 + $0x1e0] sm:$0xff]
          %v2198 = vld [vmem:[#allocation2 + $0x1e8] sm:$0xff]
          %v2199 = vld [vmem:[#allocation2 + $0x1f0] sm:$0xff]
          %v2200 = vld [vmem:[#allocation2 + $0x1f8] sm:$0xff]
          %v2201 = vpack.c.bf16 %v2138, %v2137
          %v2202 = vpack.c.bf16 %v2140, %v2139
          %v2203 = vpack.c.bf16 %v2142, %v2141
          %v2204 = vpack.c.bf16 %v2144, %v2143
          %v2205 = vpack.c.bf16 %v2146, %v2145
          %v2206 = vpack.c.bf16 %v2148, %v2147
          %v2207 = vpack.c.bf16 %v2150, %v2149
          %v2208 = vpack.c.bf16 %v2152, %v2151
          %v2209 = vpack.c.bf16 %v2154, %v2153
          %v2210 = vpack.c.bf16 %v2156, %v2155
          %v2211 = vpack.c.bf16 %v2158, %v2157
          %v2212 = vpack.c.bf16 %v2160, %v2159
          %v2213 = vpack.c.bf16 %v2162, %v2161
          %v2214 = vpack.c.bf16 %v2164, %v2163
          %v2215 = vpack.c.bf16 %v2166, %v2165
          %v2216 = vpack.c.bf16 %v2168, %v2167
          %v2217 = vpack.c.bf16 %v2170, %v2169
          %v2218 = vpack.c.bf16 %v2172, %v2171
          %v2219 = vpack.c.bf16 %v2174, %v2173
          %v2220 = vpack.c.bf16 %v2176, %v2175
          %v2221 = vpack.c.bf16 %v2178, %v2177
          %v2222 = vpack.c.bf16 %v2180, %v2179
          %v2223 = vpack.c.bf16 %v2182, %v2181
          %v2224 = vpack.c.bf16 %v2184, %v2183
          %v2225 = vpack.c.bf16 %v2186, %v2185
          %v2226 = vpack.c.bf16 %v2188, %v2187
          %v2227 = vpack.c.bf16 %v2190, %v2189
          %v2228 = vpack.c.bf16 %v2192, %v2191
          %v2229 = vpack.c.bf16 %v2194, %v2193
          %v2230 = vpack.c.bf16 %v2196, %v2195
          %v2231 = vpack.c.bf16 %v2198, %v2197
          %v2232 = vpack.c.bf16 %v2200, %v2199
          %v2233 = vld [vmem:[#allocation6] sm:$0xf]
          %v2234 = vld [vmem:[#allocation6 + $0x4] sm:$0xf]
          %v2235 = vld [vmem:[#allocation8] sm:$0x1]
          %v2237 = vlaneseq
          %v2238 = vshrl.u32 %v2237, 7
          %v2239 = vsub.s32 0, %v2238
          %v2240 = vrot.slane %v2235, %v2239
          %v2244 = vunpack.c.l.b16 %v2233
          %v2245 = vunpack.c.l.b16 %v2234
          %v2246 = vpack.c.b16 %v2245, %v2244
          %v2249 = vsel %vm2068, %v2201, 0
          %v2252 = vsel %vm2068, %v2202, 0
          %v2255 = vsel %vm2068, %v2203, 0
          %v2258 = vsel %vm2068, %v2204, 0
          %v2261 = vsel %vm2068, %v2205, 0
          %v2264 = vsel %vm2068, %v2206, 0
          %v2267 = vsel %vm2068, %v2207, 0
          %v2270 = vsel %vm2068, %v2208, 0
          %v2273 = vsel %vm2068, %v2209, 0
          %v2276 = vsel %vm2068, %v2210, 0
          %v2279 = vsel %vm2068, %v2211, 0
          %v2282 = vsel %vm2068, %v2212, 0
          %v2285 = vsel %vm2068, %v2213, 0
          %v2288 = vsel %vm2068, %v2214, 0
          %v2291 = vsel %vm2068, %v2215, 0
          %v2294 = vsel %vm2068, %v2216, 0
          %v2297 = vsel %vm2068, %v2217, 0
          %v2300 = vsel %vm2068, %v2218, 0
          %v2303 = vsel %vm2068, %v2219, 0
          %v2306 = vsel %vm2068, %v2220, 0
          %v2309 = vsel %vm2068, %v2221, 0
          %v2312 = vsel %vm2068, %v2222, 0
          %v2315 = vsel %vm2068, %v2223, 0
          %v2318 = vsel %vm2068, %v2224, 0
          %v2321 = vsel %vm2068, %v2225, 0
          %v2324 = vsel %vm2068, %v2226, 0
          %v2327 = vsel %vm2068, %v2227, 0
          %v2330 = vsel %vm2068, %v2228, 0
          %v2333 = vsel %vm2068, %v2229, 0
          %v2336 = vsel %vm2068, %v2230, 0
          %v2339 = vsel %vm2068, %v2231, 0
          %v2342 = vsel %vm2068, %v2232, 0
          %2344 = vmatprep.subr.bf16.mxu0 0
          %2345 = vmatpush1.bf16.msra.mxu0 %v2246
          %2346 = vmatprep.subr.bf16.mxu0 0
          %2347 = vmatpush1.bf16.msra.mxu0 0
          %2348 = vmatprep.subr.bf16.mxu0 0
          %2349 = vmatpush1.bf16.msra.mxu0 0
          %2350 = vmatprep.subr.bf16.mxu0 0
          %2351 = vmatpush1.bf16.msra.mxu0 0
          %2352 = vmatprep.subr.bf16.mxu0 0
          %2353 = vmatpush1.bf16.msra.mxu0 0
          %2354 = vmatprep.subr.bf16.mxu0 0
          %2355 = vmatpush1.bf16.msra.mxu0 0
          %2356 = vmatprep.subr.bf16.mxu0 0
          %2357 = vmatpush1.bf16.msra.mxu0 0
          %2358 = vmatprep.subr.bf16.mxu0 0
          %2359 = vmatpush1.bf16.msra.mxu0 0
          %2360 = vmatprep.subr.bf16.mxu0 0
          %2361 = vmatpush1.bf16.msra.mxu0 0
          %2362 = vmatprep.subr.bf16.mxu0 0
          %2363 = vmatpush1.bf16.msra.mxu0 0
          %2364 = vmatprep.subr.bf16.mxu0 0
          %2365 = vmatpush1.bf16.msra.mxu0 0
          %2366 = vmatprep.subr.bf16.mxu0 0
          %2367 = vmatpush1.bf16.msra.mxu0 0
          %2368 = vmatprep.subr.bf16.mxu0 0
          %2369 = vmatpush1.bf16.msra.mxu0 0
          %2370 = vmatprep.subr.bf16.mxu0 0
          %2371 = vmatpush1.bf16.msra.mxu0 0
          %2372 = vmatprep.subr.bf16.mxu0 0
          %2373 = vmatpush1.bf16.msra.mxu0 0
          %2374 = vmatprep.subr.bf16.mxu0 0
          %2375 = vmatpush1.bf16.msra.mxu0 0
          %2376 = vmatprep.mubr.bf16.mxu0 0
          %2377 = vmatmul.mubr.bf16.gmra.mrb[0].mxu0 %v2249
          %v2378 = vpop.f32.mrb[0].mxu0
          %v2379 = vadd.f32 %v2240, %v2378
          %v2380 = vpop.f32.mrb[0].mxu0
          %v2381 = vpop.f32.mrb[0].mxu0
          %v2382 = vadd.f32 %v2240, %v2381
          %v2383 = vpop.f32.mrb[0].mxu0
          %2384 = vmatprep.mubr.bf16.mxu0 0
          %2385 = vmatmul.mubr.bf16.gmra.mrb[0].mxu0 %v2252
          %v2386 = vpop.f32.mrb[0].mxu0
          %v2387 = vadd.f32 %v2240, %v2386
          %v2388 = vpop.f32.mrb[0].mxu0
          %v2389 = vpop.f32.mrb[0].mxu0
          %v2390 = vadd.f32 %v2240, %v2389
          %v2391 = vpop.f32.mrb[0].mxu0
          %2392 = vmatprep.mubr.bf16.mxu0 0
          %2393 = vmatmul.mubr.bf16.gmra.mrb[0].mxu0 %v2255
          %v2394 = vpop.f32.mrb[0].mxu0
          %v2395 = vadd.f32 %v2240, %v2394
          %v2396 = vpop.f32.mrb[0].mxu0
          %v2397 = vpop.f32.mrb[0].mxu0
          %v2398 = vadd.f32 %v2240, %v2397
          %v2399 = vpop.f32.mrb[0].mxu0
          %2400 = vmatprep.mubr.bf16.mxu0 0
          %2401 = vmatmul.mubr.bf16.gmra.mrb[0].mxu0 %v2258
          %v2402 = vpop.f32.mrb[0].mxu0
          %v2403 = vadd.f32 %v2240, %v2402
          %v2404 = vpop.f32.mrb[0].mxu0
          %v2405 = vpop.f32.mrb[0].mxu0
          %v2406 = vadd.f32 %v2240, %v2405
          %v2407 = vpop.f32.mrb[0].mxu0
          %2408 = vmatprep.mubr.bf16.mxu0 0
          %2409 = vmatmul.mubr.bf16.gmra.mrb[0].mxu0 %v2261
          %v2410 = vpop.f32.mrb[0].mxu0
          %v2411 = vadd.f32 %v2240, %v2410
          %v2412 = vpop.f32.mrb[0].mxu0
          %v2413 = vpop.f32.mrb[0].mxu0
          %v2414 = vadd.f32 %v2240, %v2413
          %v2415 = vpop.f32.mrb[0].mxu0
          %2416 = vmatprep.mubr.bf16.mxu0 0
          %2417 = vmatmul.mubr.bf16.gmra.mrb[0].mxu0 %v2264
          %v2418 = vpop.f32.mrb[0].mxu0
          %v2419 = vadd.f32 %v2240, %v2418
          %v2420 = vpop.f32.mrb[0].mxu0
          %v2421 = vpop.f32.mrb[0].mxu0
          %v2422 = vadd.f32 %v2240, %v2421
          %v2423 = vpop.f32.mrb[0].mxu0
          %2424 = vmatprep.mubr.bf16.mxu0 0
          %2425 = vmatmul.mubr.bf16.gmra.mrb[0].mxu0 %v2267
          %v2426 = vpop.f32.mrb[0].mxu0
          %v2427 = vadd.f32 %v2240, %v2426
          %v2428 = vpop.f32.mrb[0].mxu0
          %v2429 = vpop.f32.mrb[0].mxu0
          %v2430 = vadd.f32 %v2240, %v2429
          %v2431 = vpop.f32.mrb[0].mxu0
          %2432 = vmatprep.mubr.bf16.mxu0 0
          %2433 = vmatmul.mubr.bf16.gmra.mrb[0].mxu0 %v2270
          %v2434 = vpop.f32.mrb[0].mxu0
          %v2435 = vadd.f32 %v2240, %v2434
          %v2436 = vpop.f32.mrb[0].mxu0
          %v2437 = vpop.f32.mrb[0].mxu0
          %v2438 = vadd.f32 %v2240, %v2437
          %v2439 = vpop.f32.mrb[0].mxu0
          %2440 = vmatprep.mubr.bf16.mxu0 0
          %2441 = vmatmul.mubr.bf16.gmra.mrb[0].mxu0 %v2273
          %v2442 = vpop.f32.mrb[0].mxu0
          %v2443 = vadd.f32 %v2240, %v2442
          %v2444 = vpop.f32.mrb[0].mxu0
          %v2445 = vpop.f32.mrb[0].mxu0
          %v2446 = vadd.f32 %v2240, %v2445
          %v2447 = vpop.f32.mrb[0].mxu0
          %2448 = vmatprep.mubr.bf16.mxu0 0
          %2449 = vmatmul.mubr.bf16.gmra.mrb[0].mxu0 %v2276
          %v2450 = vpop.f32.mrb[0].mxu0
          %v2451 = vadd.f32 %v2240, %v2450
          %v2452 = vpop.f32.mrb[0].mxu0
          %v2453 = vpop.f32.mrb[0].mxu0
          %v2454 = vadd.f32 %v2240, %v2453
          %v2455 = vpop.f32.mrb[0].mxu0
          %2456 = vmatprep.mubr.bf16.mxu0 0
          %2457 = vmatmul.mubr.bf16.gmra.mrb[0].mxu0 %v2279
          %v2458 = vpop.f32.mrb[0].mxu0
          %v2459 = vadd.f32 %v2240, %v2458
          %v2460 = vpop.f32.mrb[0].mxu0
          %v2461 = vpop.f32.mrb[0].mxu0
          %v2462 = vadd.f32 %v2240, %v2461
          %v2463 = vpop.f32.mrb[0].mxu0
          %2464 = vmatprep.mubr.bf16.mxu0 0
          %2465 = vmatmul.mubr.bf16.gmra.mrb[0].mxu0 %v2282
          %v2466 = vpop.f32.mrb[0].mxu0
          %v2467 = vadd.f32 %v2240, %v2466
          %v2468 = vpop.f32.mrb[0].mxu0
          %v2469 = vpop.f32.mrb[0].mxu0
          %v2470 = vadd.f32 %v2240, %v2469
          %v2471 = vpop.f32.mrb[0].mxu0
          %2472 = vmatprep.mubr.bf16.mxu0 0
          %2473 = vmatmul.mubr.bf16.gmra.mrb[0].mxu0 %v2285
          %v2474 = vpop.f32.mrb[0].mxu0
          %v2475 = vadd.f32 %v2240, %v2474
          %v2476 = vpop.f32.mrb[0].mxu0
          %v2477 = vpop.f32.mrb[0].mxu0
          %v2478 = vadd.f32 %v2240, %v2477
          %v2479 = vpop.f32.mrb[0].mxu0
          %2480 = vmatprep.mubr.bf16.mxu0 0
          %2481 = vmatmul.mubr.bf16.gmra.mrb[0].mxu0 %v2288
          %v2482 = vpop.f32.mrb[0].mxu0
          %v2483 = vadd.f32 %v2240, %v2482
          %v2484 = vpop.f32.mrb[0].mxu0
          %v2485 = vpop.f32.mrb[0].mxu0
          %v2486 = vadd.f32 %v2240, %v2485
          %v2487 = vpop.f32.mrb[0].mxu0
          %2488 = vmatprep.mubr.bf16.mxu0 0
          %2489 = vmatmul.mubr.bf16.gmra.mrb[0].mxu0 %v2291
          %v2490 = vpop.f32.mrb[0].mxu0
          %v2491 = vadd.f32 %v2240, %v2490
          %v2492 = vpop.f32.mrb[0].mxu0
          %v2493 = vpop.f32.mrb[0].mxu0
          %v2494 = vadd.f32 %v2240, %v2493
          %v2495 = vpop.f32.mrb[0].mxu0
          %2496 = vmatprep.mubr.bf16.mxu0 0
          %2497 = vmatmul.mubr.bf16.gmra.mrb[0].mxu0 %v2294
          %v2498 = vpop.f32.mrb[0].mxu0
          %v2499 = vadd.f32 %v2240, %v2498
          %v2500 = vpop.f32.mrb[0].mxu0
          %v2501 = vpop.f32.mrb[0].mxu0
          %v2502 = vadd.f32 %v2240, %v2501
          %v2503 = vpop.f32.mrb[0].mxu0
          %2504 = vmatprep.mubr.bf16.mxu0 0
          %2505 = vmatmul.mubr.bf16.gmra.mrb[0].mxu0 %v2297
          %v2506 = vpop.f32.mrb[0].mxu0
          %v2507 = vadd.f32 %v2240, %v2506
          %v2508 = vpop.f32.mrb[0].mxu0
          %v2509 = vpop.f32.mrb[0].mxu0
          %v2510 = vadd.f32 %v2240, %v2509
          %v2511 = vpop.f32.mrb[0].mxu0
          %2512 = vmatprep.mubr.bf16.mxu0 0
          %2513 = vmatmul.mubr.bf16.gmra.mrb[0].mxu0 %v2300
          %v2514 = vpop.f32.mrb[0].mxu0
          %v2515 = vadd.f32 %v2240, %v2514
          %v2516 = vpop.f32.mrb[0].mxu0
          %v2517 = vpop.f32.mrb[0].mxu0
          %v2518 = vadd.f32 %v2240, %v2517
          %v2519 = vpop.f32.mrb[0].mxu0
          %2520 = vmatprep.mubr.bf16.mxu0 0
          %2521 = vmatmul.mubr.bf16.gmra.mrb[0].mxu0 %v2303
          %v2522 = vpop.f32.mrb[0].mxu0
          %v2523 = vadd.f32 %v2240, %v2522
          %v2524 = vpop.f32.mrb[0].mxu0
          %v2525 = vpop.f32.mrb[0].mxu0
          %v2526 = vadd.f32 %v2240, %v2525
          %v2527 = vpop.f32.mrb[0].mxu0
          %2528 = vmatprep.mubr.bf16.mxu0 0
          %2529 = vmatmul.mubr.bf16.gmra.mrb[0].mxu0 %v2306
          %v2530 = vpop.f32.mrb[0].mxu0
          %v2531 = vadd.f32 %v2240, %v2530
          %v2532 = vpop.f32.mrb[0].mxu0
          %v2533 = vpop.f32.mrb[0].mxu0
          %v2534 = vadd.f32 %v2240, %v2533
          %v2535 = vpop.f32.mrb[0].mxu0
          %2536 = vmatprep.mubr.bf16.mxu0 0
          %2537 = vmatmul.mubr.bf16.gmra.mrb[0].mxu0 %v2309
          %v2538 = vpop.f32.mrb[0].mxu0
          %v2539 = vadd.f32 %v2240, %v2538
          %v2540 = vpop.f32.mrb[0].mxu0
          %v2541 = vpop.f32.mrb[0].mxu0
          %v2542 = vadd.f32 %v2240, %v2541
          %v2543 = vpop.f32.mrb[0].mxu0
          %2544 = vmatprep.mubr.bf16.mxu0 0
          %2545 = vmatmul.mubr.bf16.gmra.mrb[0].mxu0 %v2312
          %v2546 = vpop.f32.mrb[0].mxu0
          %v2547 = vadd.f32 %v2240, %v2546
          %v2548 = vpop.f32.mrb[0].mxu0
          %v2549 = vpop.f32.mrb[0].mxu0
          %v2550 = vadd.f32 %v2240, %v2549
          %v2551 = vpop.f32.mrb[0].mxu0
          %2552 = vmatprep.mubr.bf16.mxu0 0
          %2553 = vmatmul.mubr.bf16.gmra.mrb[0].mxu0 %v2315
          %v2554 = vpop.f32.mrb[0].mxu0
          %v2555 = vadd.f32 %v2240, %v2554
          %v2556 = vpop.f32.mrb[0].mxu0
          %v2557 = vpop.f32.mrb[0].mxu0
          %v2558 = vadd.f32 %v2240, %v2557
          %v2559 = vpop.f32.mrb[0].mxu0
          %2560 = vmatprep.mubr.bf16.mxu0 0
          %2561 = vmatmul.mubr.bf16.gmra.mrb[0].mxu0 %v2318
          %v2562 = vpop.f32.mrb[0].mxu0
          %v2563 = vadd.f32 %v2240, %v2562
          %v2564 = vpop.f32.mrb[0].mxu0
          %v2565 = vpop.f32.mrb[0].mxu0
          %v2566 = vadd.f32 %v2240, %v2565
          %v2567 = vpop.f32.mrb[0].mxu0
          %2568 = vmatprep.mubr.bf16.mxu0 0
          %2569 = vmatmul.mubr.bf16.gmra.mrb[0].mxu0 %v2321
          %v2570 = vpop.f32.mrb[0].mxu0
          %v2571 = vadd.f32 %v2240, %v2570
          %v2572 = vpop.f32.mrb[0].mxu0
          %v2573 = vpop.f32.mrb[0].mxu0
          %v2574 = vadd.f32 %v2240, %v2573
          %v2575 = vpop.f32.mrb[0].mxu0
          %2576 = vmatprep.mubr.bf16.mxu0 0
          %2577 = vmatmul.mubr.bf16.gmra.mrb[0].mxu0 %v2324
          %v2578 = vpop.f32.mrb[0].mxu0
          %v2579 = vadd.f32 %v2240, %v2578
          %v2580 = vpop.f32.mrb[0].mxu0
          %v2581 = vpop.f32.mrb[0].mxu0
          %v2582 = vadd.f32 %v2240, %v2581
          %v2583 = vpop.f32.mrb[0].mxu0
          %2584 = vmatprep.mubr.bf16.mxu0 0
          %2585 = vmatmul.mubr.bf16.gmra.mrb[0].mxu0 %v2327
          %v2586 = vpop.f32.mrb[0].mxu0
          %v2587 = vadd.f32 %v2240, %v2586
          %v2588 = vpop.f32.mrb[0].mxu0
          %v2589 = vpop.f32.mrb[0].mxu0
          %v2590 = vadd.f32 %v2240, %v2589
          %v2591 = vpop.f32.mrb[0].mxu0
          %2592 = vmatprep.mubr.bf16.mxu0 0
          %2593 = vmatmul.mubr.bf16.gmra.mrb[0].mxu0 %v2330
          %v2594 = vpop.f32.mrb[0].mxu0
          %v2595 = vadd.f32 %v2240, %v2594
          %v2596 = vpop.f32.mrb[0].mxu0
          %v2597 = vpop.f32.mrb[0].mxu0
          %v2598 = vadd.f32 %v2240, %v2597
          %v2599 = vpop.f32.mrb[0].mxu0
          %2600 = vmatprep.mubr.bf16.mxu0 0
          %2601 = vmatmul.mubr.bf16.gmra.mrb[0].mxu0 %v2333
          %v2602 = vpop.f32.mrb[0].mxu0
          %v2603 = vadd.f32 %v2240, %v2602
          %v2604 = vpop.f32.mrb[0].mxu0
          %v2605 = vpop.f32.mrb[0].mxu0
          %v2606 = vadd.f32 %v2240, %v2605
          %v2607 = vpop.f32.mrb[0].mxu0
          %2608 = vmatprep.mubr.bf16.mxu0 0
          %2609 = vmatmul.mubr.bf16.gmra.mrb[0].mxu0 %v2336
          %v2610 = vpop.f32.mrb[0].mxu0
          %v2611 = vadd.f32 %v2240, %v2610
          %v2612 = vpop.f32.mrb[0].mxu0
          %v2613 = vpop.f32.mrb[0].mxu0
          %v2614 = vadd.f32 %v2240, %v2613
          %v2615 = vpop.f32.mrb[0].mxu0
          %2616 = vmatprep.mubr.bf16.mxu0 0
          %2617 = vmatmul.mubr.bf16.gmra.mrb[0].mxu0 %v2339
          %v2618 = vpop.f32.mrb[0].mxu0
          %v2619 = vadd.f32 %v2240, %v2618
          %v2620 = vpop.f32.mrb[0].mxu0
          %v2621 = vpop.f32.mrb[0].mxu0
          %v2622 = vadd.f32 %v2240, %v2621
          %v2623 = vpop.f32.mrb[0].mxu0
          %2624 = vmatprep.mubr.bf16.mxu0 0
          %2625 = vmatmul.mubr.bf16.gmra.mrb[0].mxu0 %v2342
          %v2626 = vpop.f32.mrb[0].mxu0
          %v2627 = vadd.f32 %v2240, %v2626
          %v2628 = vpop.f32.mrb[0].mxu0
          %v2629 = vpop.f32.mrb[0].mxu0
          %v2630 = vadd.f32 %v2240, %v2629
          %v2631 = vpop.f32.mrb[0].mxu0
          %2632 = vdwg.mxu0
          %vm2633 = vcmp.gt.f32.partialorder %v2379, 0.0
          %vm2634 = vcmp.gt.f32.partialorder %v2382, 0.0
          %vm2635 = vcmp.gt.f32.partialorder %v2387, 0.0
          %vm2636 = vcmp.gt.f32.partialorder %v2390, 0.0
          %vm2637 = vcmp.gt.f32.partialorder %v2395, 0.0
          %vm2638 = vcmp.gt.f32.partialorder %v2398, 0.0
          %vm2639 = vcmp.gt.f32.partialorder %v2403, 0.0
          %vm2640 = vcmp.gt.f32.partialorder %v2406, 0.0
          %vm2641 = vcmp.gt.f32.partialorder %v2411, 0.0
          %vm2642 = vcmp.gt.f32.partialorder %v2414, 0.0
          %vm2643 = vcmp.gt.f32.partialorder %v2419, 0.0
          %vm2644 = vcmp.gt.f32.partialorder %v2422, 0.0
          %vm2645 = vcmp.gt.f32.partialorder %v2427, 0.0
          %vm2646 = vcmp.gt.f32.partialorder %v2430, 0.0
          %vm2647 = vcmp.gt.f32.partialorder %v2435, 0.0
          %vm2648 = vcmp.gt.f32.partialorder %v2438, 0.0
          %vm2649 = vcmp.gt.f32.partialorder %v2443, 0.0
          %vm2650 = vcmp.gt.f32.partialorder %v2446, 0.0
          %vm2651 = vcmp.gt.f32.partialorder %v2451, 0.0
          %vm2652 = vcmp.gt.f32.partialorder %v2454, 0.0
          %vm2653 = vcmp.gt.f32.partialorder %v2459, 0.0
          %vm2654 = vcmp.gt.f32.partialorder %v2462, 0.0
          %vm2655 = vcmp.gt.f32.partialorder %v2467, 0.0
          %vm2656 = vcmp.gt.f32.partialorder %v2470, 0.0
          %vm2657 = vcmp.gt.f32.partialorder %v2475, 0.0
          %vm2658 = vcmp.gt.f32.partialorder %v2478, 0.0
          %vm2659 = vcmp.gt.f32.partialorder %v2483, 0.0
          %vm2660 = vcmp.gt.f32.partialorder %v2486, 0.0
          %vm2661 = vcmp.gt.f32.partialorder %v2491, 0.0
          %vm2662 = vcmp.gt.f32.partialorder %v2494, 0.0
          %vm2663 = vcmp.gt.f32.partialorder %v2499, 0.0
          %vm2664 = vcmp.gt.f32.partialorder %v2502, 0.0
          %vm2665 = vcmp.gt.f32.partialorder %v2507, 0.0
          %vm2666 = vcmp.gt.f32.partialorder %v2510, 0.0
          %vm2667 = vcmp.gt.f32.partialorder %v2515, 0.0
          %vm2668 = vcmp.gt.f32.partialorder %v2518, 0.0
          %vm2669 = vcmp.gt.f32.partialorder %v2523, 0.0
          %vm2670 = vcmp.gt.f32.partialorder %v2526, 0.0
          %vm2671 = vcmp.gt.f32.partialorder %v2531, 0.0
          %vm2672 = vcmp.gt.f32.partialorder %v2534, 0.0
          %vm2673 = vcmp.gt.f32.partialorder %v2539, 0.0
          %vm2674 = vcmp.gt.f32.partialorder %v2542, 0.0
          %vm2675 = vcmp.gt.f32.partialorder %v2547, 0.0
          %vm2676 = vcmp.gt.f32.partialorder %v2550, 0.0
          %vm2677 = vcmp.gt.f32.partialorder %v2555, 0.0
          %vm2678 = vcmp.gt.f32.partialorder %v2558, 0.0
          %vm2679 = vcmp.gt.f32.partialorder %v2563, 0.0
          %vm2680 = vcmp.gt.f32.partialorder %v2566, 0.0
          %vm2681 = vcmp.gt.f32.partialorder %v2571, 0.0
          %vm2682 = vcmp.gt.f32.partialorder %v2574, 0.0
          %vm2683 = vcmp.gt.f32.partialorder %v2579, 0.0
          %vm2684 = vcmp.gt.f32.partialorder %v2582, 0.0
          %vm2685 = vcmp.gt.f32.partialorder %v2587, 0.0
          %vm2686 = vcmp.gt.f32.partialorder %v2590, 0.0
          %vm2687 = vcmp.gt.f32.partialorder %v2595, 0.0
          %vm2688 = vcmp.gt.f32.partialorder %v2598, 0.0
          %vm2689 = vcmp.gt.f32.partialorder %v2603, 0.0
          %vm2690 = vcmp.gt.f32.partialorder %v2606, 0.0
          %vm2691 = vcmp.gt.f32.partialorder %v2611, 0.0
          %vm2692 = vcmp.gt.f32.partialorder %v2614, 0.0
          %vm2693 = vcmp.gt.f32.partialorder %v2619, 0.0
          %vm2694 = vcmp.gt.f32.partialorder %v2622, 0.0
          %vm2695 = vcmp.gt.f32.partialorder %v2627, 0.0
          %vm2696 = vcmp.gt.f32.partialorder %v2630, 0.0
          %v2697 = vmul.f32 %v2379, 0.01
          %v2698 = vmul.f32 %v2382, 0.01
          %v2699 = vmul.f32 %v2387, 0.01
          %v2700 = vmul.f32 %v2390, 0.01
          %v2701 = vmul.f32 %v2395, 0.01
          %v2702 = vmul.f32 %v2398, 0.01
          %v2703 = vmul.f32 %v2403, 0.01
          %v2704 = vmul.f32 %v2406, 0.01
          %v2705 = vmul.f32 %v2411, 0.01
          %v2706 = vmul.f32 %v2414, 0.01
          %v2707 = vmul.f32 %v2419, 0.01
          %v2708 = vmul.f32 %v2422, 0.01
          %v2709 = vmul.f32 %v2427, 0.01
          %v2710 = vmul.f32 %v2430, 0.01
          %v2711 = vmul.f32 %v2435, 0.01
          %v2712 = vmul.f32 %v2438, 0.01
          %v2713 = vmul.f32 %v2443, 0.01
          %v2714 = vmul.f32 %v2446, 0.01
          %v2715 = vmul.f32 %v2451, 0.01
          %v2716 = vmul.f32 %v2454, 0.01
          %v2717 = vmul.f32 %v2459, 0.01
          %v2718 = vmul.f32 %v2462, 0.01
          %v2719 = vmul.f32 %v2467, 0.01
          %v2720 = vmul.f32 %v2470, 0.01
          %v2721 = vmul.f32 %v2475, 0.01
          %v2722 = vmul.f32 %v2478, 0.01
          %v2723 = vmul.f32 %v2483, 0.01
          %v2724 = vmul.f32 %v2486, 0.01
          %v2725 = vmul.f32 %v2491, 0.01
          %v2726 = vmul.f32 %v2494, 0.01
          %v2727 = vmul.f32 %v2499, 0.01
          %v2728 = vmul.f32 %v2502, 0.01
          %v2729 = vmul.f32 %v2507, 0.01
          %v2730 = vmul.f32 %v2510, 0.01
          %v2731 = vmul.f32 %v2515, 0.01
          %v2732 = vmul.f32 %v2518, 0.01
          %v2733 = vmul.f32 %v2523, 0.01
          %v2734 = vmul.f32 %v2526, 0.01
          %v2735 = vmul.f32 %v2531, 0.01
          %v2736 = vmul.f32 %v2534, 0.01
          %v2737 = vmul.f32 %v2539, 0.01
          %v2738 = vmul.f32 %v2542, 0.01
          %v2739 = vmul.f32 %v2547, 0.01
          %v2740 = vmul.f32 %v2550, 0.01
          %v2741 = vmul.f32 %v2555, 0.01
          %v2742 = vmul.f32 %v2558, 0.01
          %v2743 = vmul.f32 %v2563, 0.01
          %v2744 = vmul.f32 %v2566, 0.01
          %v2745 = vmul.f32 %v2571, 0.01
          %v2746 = vmul.f32 %v2574, 0.01
          %v2747 = vmul.f32 %v2579, 0.01
          %v2748 = vmul.f32 %v2582, 0.01
          %v2749 = vmul.f32 %v2587, 0.01
          %v2750 = vmul.f32 %v2590, 0.01
          %v2751 = vmul.f32 %v2595, 0.01
          %v2752 = vmul.f32 %v2598, 0.01
          %v2753 = vmul.f32 %v2603, 0.01
          %v2754 = vmul.f32 %v2606, 0.01
          %v2755 = vmul.f32 %v2611, 0.01
          %v2756 = vmul.f32 %v2614, 0.01
          %v2757 = vmul.f32 %v2619, 0.01
          %v2758 = vmul.f32 %v2622, 0.01
          %v2759 = vmul.f32 %v2627, 0.01
          %v2760 = vmul.f32 %v2630, 0.01
          %v2761 = vsel %vm2633, %v2379, %v2697
          %v2762 = vsel %vm2634, %v2382, %v2698
          %v2763 = vsel %vm2635, %v2387, %v2699
          %v2764 = vsel %vm2636, %v2390, %v2700
          %v2765 = vsel %vm2637, %v2395, %v2701
          %v2766 = vsel %vm2638, %v2398, %v2702
          %v2767 = vsel %vm2639, %v2403, %v2703
          %v2768 = vsel %vm2640, %v2406, %v2704
          %v2769 = vsel %vm2641, %v2411, %v2705
          %v2770 = vsel %vm2642, %v2414, %v2706
          %v2771 = vsel %vm2643, %v2419, %v2707
          %v2772 = vsel %vm2644, %v2422, %v2708
          %v2773 = vsel %vm2645, %v2427, %v2709
          %v2774 = vsel %vm2646, %v2430, %v2710
          %v2775 = vsel %vm2647, %v2435, %v2711
          %v2776 = vsel %vm2648, %v2438, %v2712
          %v2777 = vsel %vm2649, %v2443, %v2713
          %v2778 = vsel %vm2650, %v2446, %v2714
          %v2779 = vsel %vm2651, %v2451, %v2715
          %v2780 = vsel %vm2652, %v2454, %v2716
          %v2781 = vsel %vm2653, %v2459, %v2717
          %v2782 = vsel %vm2654, %v2462, %v2718
          %v2783 = vsel %vm2655, %v2467, %v2719
          %v2784 = vsel %vm2656, %v2470, %v2720
          %v2785 = vsel %vm2657, %v2475, %v2721
          %v2786 = vsel %vm2658, %v2478, %v2722
          %v2787 = vsel %vm2659, %v2483, %v2723
          %v2788 = vsel %vm2660, %v2486, %v2724
          %v2789 = vsel %vm2661, %v2491, %v2725
          %v2790 = vsel %vm2662, %v2494, %v2726
          %v2791 = vsel %vm2663, %v2499, %v2727
          %v2792 = vsel %vm2664, %v2502, %v2728
          %v2793 = vsel %vm2665, %v2507, %v2729
          %v2794 = vsel %vm2666, %v2510, %v2730
          %v2795 = vsel %vm2667, %v2515, %v2731
          %v2796 = vsel %vm2668, %v2518, %v2732
          %v2797 = vsel %vm2669, %v2523, %v2733
          %v2798 = vsel %vm2670, %v2526, %v2734
          %v2799 = vsel %vm2671, %v2531, %v2735
          %v2800 = vsel %vm2672, %v2534, %v2736
          %v2801 = vsel %vm2673, %v2539, %v2737
          %v2802 = vsel %vm2674, %v2542, %v2738
          %v2803 = vsel %vm2675, %v2547, %v2739
          %v2804 = vsel %vm2676, %v2550, %v2740
          %v2805 = vsel %vm2677, %v2555, %v2741
          %v2806 = vsel %vm2678, %v2558, %v2742
          %v2807 = vsel %vm2679, %v2563, %v2743
          %v2808 = vsel %vm2680, %v2566, %v2744
          %v2809 = vsel %vm2681, %v2571, %v2745
          %v2810 = vsel %vm2682, %v2574, %v2746
          %v2811 = vsel %vm2683, %v2579, %v2747
          %v2812 = vsel %vm2684, %v2582, %v2748
          %v2813 = vsel %vm2685, %v2587, %v2749
          %v2814 = vsel %vm2686, %v2590, %v2750
          %v2815 = vsel %vm2687, %v2595, %v2751
          %v2816 = vsel %vm2688, %v2598, %v2752
          %v2817 = vsel %vm2689, %v2603, %v2753
          %v2818 = vsel %vm2690, %v2606, %v2754
          %v2819 = vsel %vm2691, %v2611, %v2755
          %v2820 = vsel %vm2692, %v2614, %v2756
          %v2821 = vsel %vm2693, %v2619, %v2757
          %v2822 = vsel %vm2694, %v2622, %v2758
          %v2823 = vsel %vm2695, %v2627, %v2759
          %v2824 = vsel %vm2696, %v2630, %v2760
          %v2825 = vpack.c.bf16 %v2762, %v2761
          %v2826 = vpack.c.bf16 %v2764, %v2763
          %v2827 = vpack.c.bf16 %v2766, %v2765
          %v2828 = vpack.c.bf16 %v2768, %v2767
          %v2829 = vpack.c.bf16 %v2770, %v2769
          %v2830 = vpack.c.bf16 %v2772, %v2771
          %v2831 = vpack.c.bf16 %v2774, %v2773
          %v2832 = vpack.c.bf16 %v2776, %v2775
          %v2833 = vpack.c.bf16 %v2778, %v2777
          %v2834 = vpack.c.bf16 %v2780, %v2779
          %v2835 = vpack.c.bf16 %v2782, %v2781
          %v2836 = vpack.c.bf16 %v2784, %v2783
          %v2837 = vpack.c.bf16 %v2786, %v2785
          %v2838 = vpack.c.bf16 %v2788, %v2787
          %v2839 = vpack.c.bf16 %v2790, %v2789
          %v2840 = vpack.c.bf16 %v2792, %v2791
          %v2841 = vpack.c.bf16 %v2794, %v2793
          %v2842 = vpack.c.bf16 %v2796, %v2795
          %v2843 = vpack.c.bf16 %v2798, %v2797
          %v2844 = vpack.c.bf16 %v2800, %v2799
          %v2845 = vpack.c.bf16 %v2802, %v2801
          %v2846 = vpack.c.bf16 %v2804, %v2803
          %v2847 = vpack.c.bf16 %v2806, %v2805
          %v2848 = vpack.c.bf16 %v2808, %v2807
          %v2849 = vpack.c.bf16 %v2810, %v2809
          %v2850 = vpack.c.bf16 %v2812, %v2811
          %v2851 = vpack.c.bf16 %v2814, %v2813
          %v2852 = vpack.c.bf16 %v2816, %v2815
          %v2853 = vpack.c.bf16 %v2818, %v2817
          %v2854 = vpack.c.bf16 %v2820, %v2819
          %v2855 = vpack.c.bf16 %v2822, %v2821
          %v2856 = vpack.c.bf16 %v2824, %v2823
          %v2889 = vunpack.c.l.b16 %v2825
          %v2890 = vunpack.c.h.b16 %v2825
          %v2891 = vunpack.c.l.b16 %v2826
          %v2892 = vunpack.c.h.b16 %v2826
          %v2893 = vunpack.c.l.b16 %v2827
          %v2894 = vunpack.c.h.b16 %v2827
          %v2895 = vunpack.c.l.b16 %v2828
          %v2896 = vunpack.c.h.b16 %v2828
          %v2897 = vunpack.c.l.b16 %v2829
          %v2898 = vunpack.c.h.b16 %v2829
          %v2899 = vunpack.c.l.b16 %v2830
          %v2900 = vunpack.c.h.b16 %v2830
          %v2901 = vunpack.c.l.b16 %v2831
          %v2902 = vunpack.c.h.b16 %v2831
          %v2903 = vunpack.c.l.b16 %v2832
          %v2904 = vunpack.c.h.b16 %v2832
          %v2905 = vunpack.c.l.b16 %v2833
          %v2906 = vunpack.c.h.b16 %v2833
          %v2907 = vunpack.c.l.b16 %v2834
          %v2908 = vunpack.c.h.b16 %v2834
          %v2909 = vunpack.c.l.b16 %v2835
          %v2910 = vunpack.c.h.b16 %v2835
          %v2911 = vunpack.c.l.b16 %v2836
          %v2912 = vunpack.c.h.b16 %v2836
          %v2913 = vunpack.c.l.b16 %v2837
          %v2914 = vunpack.c.h.b16 %v2837
          %v2915 = vunpack.c.l.b16 %v2838
          %v2916 = vunpack.c.h.b16 %v2838
          %v2917 = vunpack.c.l.b16 %v2839
          %v2918 = vunpack.c.h.b16 %v2839
          %v2919 = vunpack.c.l.b16 %v2840
          %v2920 = vunpack.c.h.b16 %v2840
          %v2921 = vunpack.c.l.b16 %v2841
          %v2922 = vunpack.c.h.b16 %v2841
          %v2923 = vunpack.c.l.b16 %v2842
          %v2924 = vunpack.c.h.b16 %v2842
          %v2925 = vunpack.c.l.b16 %v2843
          %v2926 = vunpack.c.h.b16 %v2843
          %v2927 = vunpack.c.l.b16 %v2844
          %v2928 = vunpack.c.h.b16 %v2844
          %v2929 = vunpack.c.l.b16 %v2845
          %v2930 = vunpack.c.h.b16 %v2845
          %v2931 = vunpack.c.l.b16 %v2846
          %v2932 = vunpack.c.h.b16 %v2846
          %v2933 = vunpack.c.l.b16 %v2847
          %v2934 = vunpack.c.h.b16 %v2847
          %v2935 = vunpack.c.l.b16 %v2848
          %v2936 = vunpack.c.h.b16 %v2848
          %v2937 = vunpack.c.l.b16 %v2849
          %v2938 = vunpack.c.h.b16 %v2849
          %v2939 = vunpack.c.l.b16 %v2850
          %v2940 = vunpack.c.h.b16 %v2850
          %v2941 = vunpack.c.l.b16 %v2851
          %v2942 = vunpack.c.h.b16 %v2851
          %v2943 = vunpack.c.l.b16 %v2852
          %v2944 = vunpack.c.h.b16 %v2852
          %v2945 = vunpack.c.l.b16 %v2853
          %v2946 = vunpack.c.h.b16 %v2853
          %v2947 = vunpack.c.l.b16 %v2854
          %v2948 = vunpack.c.h.b16 %v2854
          %v2949 = vunpack.c.l.b16 %v2855
          %v2950 = vunpack.c.h.b16 %v2855
          %v2951 = vunpack.c.l.b16 %v2856
          %v2952 = vunpack.c.h.b16 %v2856
          %v2953 = vpack.c.b16 %v2889, %v2889
          %v2954 = vpack.c.b16 %v2890, %v2890
          %v2955 = vpack.c.b16 %v2891, %v2891
          %v2956 = vpack.c.b16 %v2892, %v2892
          %v2957 = vpack.c.b16 %v2893, %v2893
          %v2958 = vpack.c.b16 %v2894, %v2894
          %v2959 = vpack.c.b16 %v2895, %v2895
          %v2960 = vpack.c.b16 %v2896, %v2896
          %v2961 = vpack.c.b16 %v2897, %v2897
          %v2962 = vpack.c.b16 %v2898, %v2898
          %v2963 = vpack.c.b16 %v2899, %v2899
          %v2964 = vpack.c.b16 %v2900, %v2900
          %v2965 = vpack.c.b16 %v2901, %v2901
          %v2966 = vpack.c.b16 %v2902, %v2902
          %v2967 = vpack.c.b16 %v2903, %v2903
          %v2968 = vpack.c.b16 %v2904, %v2904
          %v2969 = vpack.c.b16 %v2905, %v2905
          %v2970 = vpack.c.b16 %v2906, %v2906
          %v2971 = vpack.c.b16 %v2907, %v2907
          %v2972 = vpack.c.b16 %v2908, %v2908
          %v2973 = vpack.c.b16 %v2909, %v2909
          %v2974 = vpack.c.b16 %v2910, %v2910
          %v2975 = vpack.c.b16 %v2911, %v2911
          %v2976 = vpack.c.b16 %v2912, %v2912
          %v2977 = vpack.c.b16 %v2913, %v2913
          %v2978 = vpack.c.b16 %v2914, %v2914
          %v2979 = vpack.c.b16 %v2915, %v2915
          %v2980 = vpack.c.b16 %v2916, %v2916
          %v2981 = vpack.c.b16 %v2917, %v2917
          %v2982 = vpack.c.b16 %v2918, %v2918
          %v2983 = vpack.c.b16 %v2919, %v2919
          %v2984 = vpack.c.b16 %v2920, %v2920
          %v2985 = vpack.c.b16 %v2921, %v2921
          %v2986 = vpack.c.b16 %v2922, %v2922
          %v2987 = vpack.c.b16 %v2923, %v2923
          %v2988 = vpack.c.b16 %v2924, %v2924
          %v2989 = vpack.c.b16 %v2925, %v2925
          %v2990 = vpack.c.b16 %v2926, %v2926
          %v2991 = vpack.c.b16 %v2927, %v2927
          %v2992 = vpack.c.b16 %v2928, %v2928
          %v2993 = vpack.c.b16 %v2929, %v2929
          %v2994 = vpack.c.b16 %v2930, %v2930
          %v2995 = vpack.c.b16 %v2931, %v2931
          %v2996 = vpack.c.b16 %v2932, %v2932
          %v2997 = vpack.c.b16 %v2933, %v2933
          %v2998 = vpack.c.b16 %v2934, %v2934
          %v2999 = vpack.c.b16 %v2935, %v2935
          %v3000 = vpack.c.b16 %v2936, %v2936
          %v3001 = vpack.c.b16 %v2937, %v2937
          %v3002 = vpack.c.b16 %v2938, %v2938
          %v3003 = vpack.c.b16 %v2939, %v2939
          %v3004 = vpack.c.b16 %v2940, %v2940
          %v3005 = vpack.c.b16 %v2941, %v2941
          %v3006 = vpack.c.b16 %v2942, %v2942
          %v3007 = vpack.c.b16 %v2943, %v2943
          %v3008 = vpack.c.b16 %v2944, %v2944
          %v3009 = vpack.c.b16 %v2945, %v2945
          %v3010 = vpack.c.b16 %v2946, %v2946
          %v3011 = vpack.c.b16 %v2947, %v2947
          %v3012 = vpack.c.b16 %v2948, %v2948
          %v3013 = vpack.c.b16 %v2949, %v2949
          %v3014 = vpack.c.b16 %v2950, %v2950
          %v3015 = vpack.c.b16 %v2951, %v2951
          %v3016 = vpack.c.b16 %v2952, %v2952
          %3081 = vst [vmem:[%s259] sm:$0xf] %v2953
          %3082 = vst [vmem:[%s259 + $0x4] sm:$0xf] %v2954
          %3083 = vst [vmem:[%s259 + $0x8] sm:$0xf] %v2955
          %3084 = vst [vmem:[%s259 + $0xc] sm:$0xf] %v2956
          %3085 = vst [vmem:[%s259 + $0x10] sm:$0xf] %v2957
          %3086 = vst [vmem:[%s259 + $0x14] sm:$0xf] %v2958
          %3087 = vst [vmem:[%s259 + $0x18] sm:$0xf] %v2959
          %3088 = vst [vmem:[%s259 + $0x1c] sm:$0xf] %v2960
          %3089 = vst [vmem:[%s259 + $0x20] sm:$0xf] %v2961
          %3090 = vst [vmem:[%s259 + $0x24] sm:$0xf] %v2962
          %3091 = vst [vmem:[%s259 + $0x28] sm:$0xf] %v2963
          %3092 = vst [vmem:[%s259 + $0x2c] sm:$0xf] %v2964
          %3093 = vst [vmem:[%s259 + $0x30] sm:$0xf] %v2965
          %3094 = vst [vmem:[%s259 + $0x34] sm:$0xf] %v2966
          %3095 = vst [vmem:[%s259 + $0x38] sm:$0xf] %v2967
          %3096 = vst [vmem:[%s259 + $0x3c] sm:$0xf] %v2968
          %3097 = vst [vmem:[%s259 + $0x40] sm:$0xf] %v2969
          %3098 = vst [vmem:[%s259 + $0x44] sm:$0xf] %v2970
          %3099 = vst [vmem:[%s259 + $0x48] sm:$0xf] %v2971
          %3100 = vst [vmem:[%s259 + $0x4c] sm:$0xf] %v2972
          %3101 = vst [vmem:[%s259 + $0x50] sm:$0xf] %v2973
          %3102 = vst [vmem:[%s259 + $0x54] sm:$0xf] %v2974
          %3103 = vst [vmem:[%s259 + $0x58] sm:$0xf] %v2975
          %3104 = vst [vmem:[%s259 + $0x5c] sm:$0xf] %v2976
          %3105 = vst [vmem:[%s259 + $0x60] sm:$0xf] %v2977
          %3106 = vst [vmem:[%s259 + $0x64] sm:$0xf] %v2978
          %3107 = vst [vmem:[%s259 + $0x68] sm:$0xf] %v2979
          %3108 = vst [vmem:[%s259 + $0x6c] sm:$0xf] %v2980
          %3109 = vst [vmem:[%s259 + $0x70] sm:$0xf] %v2981
          %3110 = vst [vmem:[%s259 + $0x74] sm:$0xf] %v2982
          %3111 = vst [vmem:[%s259 + $0x78] sm:$0xf] %v2983
          %3112 = vst [vmem:[%s259 + $0x7c] sm:$0xf] %v2984
          %3113 = vst [vmem:[%s259 + $0x80] sm:$0xf] %v2985
          %3114 = vst [vmem:[%s259 + $0x84] sm:$0xf] %v2986
          %3115 = vst [vmem:[%s259 + $0x88] sm:$0xf] %v2987
          %3116 = vst [vmem:[%s259 + $0x8c] sm:$0xf] %v2988
          %3117 = vst [vmem:[%s259 + $0x90] sm:$0xf] %v2989
          %3118 = vst [vmem:[%s259 + $0x94] sm:$0xf] %v2990
          %3119 = vst [vmem:[%s259 + $0x98] sm:$0xf] %v2991
          %3120 = vst [vmem:[%s259 + $0x9c] sm:$0xf] %v2992
          %3121 = vst [vmem:[%s259 + $0xa0] sm:$0xf] %v2993
          %3122 = vst [vmem:[%s259 + $0xa4] sm:$0xf] %v2994
          %3123 = vst [vmem:[%s259 + $0xa8] sm:$0xf] %v2995
          %3124 = vst [vmem:[%s259 + $0xac] sm:$0xf] %v2996
          %3125 = vst [vmem:[%s259 + $0xb0] sm:$0xf] %v2997
          %3126 = vst [vmem:[%s259 + $0xb4] sm:$0xf] %v2998
          %3127 = vst [vmem:[%s259 + $0xb8] sm:$0xf] %v2999
          %3128 = vst [vmem:[%s259 + $0xbc] sm:$0xf] %v3000
          %3129 = vst [vmem:[%s259 + $0xc0] sm:$0xf] %v3001
          %3130 = vst [vmem:[%s259 + $0xc4] sm:$0xf] %v3002
          %3131 = vst [vmem:[%s259 + $0xc8] sm:$0xf] %v3003
          %3132 = vst [vmem:[%s259 + $0xcc] sm:$0xf] %v3004
          %3133 = vst [vmem:[%s259 + $0xd0] sm:$0xf] %v3005
          %3134 = vst [vmem:[%s259 + $0xd4] sm:$0xf] %v3006
          %3135 = vst [vmem:[%s259 + $0xd8] sm:$0xf] %v3007
          %3136 = vst [vmem:[%s259 + $0xdc] sm:$0xf] %v3008
          %3137 = vst [vmem:[%s259 + $0xe0] sm:$0xf] %v3009
          %3138 = vst [vmem:[%s259 + $0xe4] sm:$0xf] %v3010
          %3139 = vst [vmem:[%s259 + $0xe8] sm:$0xf] %v3011
          %3140 = vst [vmem:[%s259 + $0xec] sm:$0xf] %v3012
          %3141 = vst [vmem:[%s259 + $0xf0] sm:$0xf] %v3013
          %3142 = vst [vmem:[%s259 + $0xf4] sm:$0xf] %v3014
          %3143 = vst [vmem:[%s259 + $0xf8] sm:$0xf] %v3015
          %3144 = vst [vmem:[%s259 + $0xfc] sm:$0xf] %v3016
        $region56: #{tpu_custom_call.1} parent=35 // pred_fallthru
          _
        %s3145 = sand.u32 %s133, 1
        %s3146 = scalar_lea.sflag [#allocation5], %s3145
        %s3147 = sand.u32 %s133, 1
        %s3148 = smul.addr %s3147, 256
        %s3149 = scalar_lea.vmem [#allocation9], %s3148
        // Predicated region
        $region57: #{tpu_custom_call.1} parent=35 // pred_check
          %p3150 = pneg %p143
        $region58: #{tpu_custom_call.1} parent=35 // pred_check_branch
          %3152 = sbr.rel (%p3150) target = $region60
        $region59: #{tpu_custom_call.1} parent=35 // pred_region
          %s3153 = smul.u32 64, %s26
          %s3155 = ssub.s32 4096, 4096
          %3156 = vsyncadd %s3146, %s3155
          %s3157 = smul.addr %s3153, 64
          %s3158 = scalar_lea.hbm %s4, %s3157
          %s3159 = sshll.u32 %s3149, 4
          %s3160 = int_to_ptr.vmem [resolvable:$true] %s3159
          %3165 = dma.vmem_to_hbm [thread:$0]  %s3160, 4096, %s3158, %s3146, 64, 64, 4
        $region60: #{tpu_custom_call.1} parent=35 // pred_fallthru
          _
      $region36: #{tpu_custom_call.1} parent=5 // pred_fallthru
        _
      %p3166 = scmp.le.s32.totalorder 2, %s17
      // Predicated region
      $region61: #{tpu_custom_call.1} parent=5 // pred_check
        %p3167 = pneg %p3166
      $region62: #{tpu_custom_call.1} parent=5 // pred_check_branch
        %3169 = sbr.rel (%p3167) target = $region64
      $region63: #{tpu_custom_call.1} parent=5 // pred_region
        %s3170 = ssub.s32 %s17, 2
        // Predicated region
        $region65: #{tpu_custom_call.1} parent=63 // pred_check
          %p3171 = pneg %p149
        $region66: #{tpu_custom_call.1} parent=63 // pred_check_branch
          %3173 = sbr.rel (%p3171) target = $region68
        $region67: #{tpu_custom_call.1} parent=63 // pred_region
          %s3174 = sand.u32 %s134, 1
          %s3175 = scalar_lea.sflag [#allocation5], %s3174
          %s3176 = sand.u32 %s134, 1
          %s3177 = smul.addr %s3176, 256
          %s3178 = scalar_lea.vmem [#allocation9], %s3177
          %3179 = dma.done %s3175, 4096
        $region68: #{tpu_custom_call.1} parent=63 // pred_fallthru
          _
      $region64: #{tpu_custom_call.1} parent=5 // pred_fallthru
        _
    $region6: #{tpu_custom_call.1} parent=1 // loop_footer
      %s21 = sadd.s32 1, %s17
    $region7: #{tpu_custom_call.1} parent=1 // loop_footer_branch
      %16 = sbr.rel target = $region3
    $region8: #{tpu_custom_call.1} parent=1 // loop_exit
      _
    %3180 = vsyncpa [#allocation4], 1
    %s3181 = scalar_lea.sflag [#allocation4], 1
    %3182 = vsyncpa %s3181, 1
    %3183 = vsyncpa [#allocation7], 1
    %3184 = vsyncpa [#allocation5], 1
    %s3185 = scalar_lea.sflag [#allocation5], 1
    %3186 = vsyncpa %s3185, 1

</llo_original>
